<compile_context>
chip_gen: v5e
topology: v5e:2x2
jax: 0.10.0
libtpu: 0.0.40
codegen_flags: <defaults>
</compile_context>

<pallas_src>
import numpy as np
import jax
import jax.numpy as jnp
from jax import lax
from jax.experimental import pallas as pl
from jax.experimental.pallas import tpu as pltpu


def _round_up(x, m):
    return (x + m - 1) // m * m


# ------------------------------ Pallas kernel -------------------------------

def _classblock_kernel(x_ref, w1_ref, b1_ref, w2_ref, b2_ref, out_ref, feat_ref):
    """Fused ClassBlock for one part: (Linear+BN, Dropout=id) -> Linear; L2-norm feature."""
    x = x_ref[0]            # (B, K)   bf16
    w1 = w1_ref[0]          # (K, N1)  bf16 (BN scale pre-folded)
    w2 = w2_ref[0]          # (N1, N2) bf16

    # Bottleneck linear: bf16 MXU matmul, f32 accumulation, BN offset/bias added in f32.
    feat = jnp.dot(x, w1, preferred_element_type=jnp.float32) + b1_ref[0]
    # Dropout is identity in inference mode.

    # Classifier head. feat is cast to bf16 for the MXU (matches the JAX reference;
    # slight deviation from PyTorch fp32 GEMM, well within tolerance given W2 std=1e-3).
    logits = jnp.dot(feat.astype(w2.dtype), w2,
                     preferred_element_type=jnp.float32) + b2_ref[0]
    out_ref[0] = logits.astype(out_ref.dtype)

    # Normalize(power=2): feat / sqrt(sum(feat^2, axis=1) + eps); eps guards zero rows.
    inv_norm = lax.rsqrt(jnp.sum(feat * feat, axis=-1, keepdims=True) + 1e-12)
    feat_ref[0] = (feat * inv_norm).astype(feat_ref.dtype)


def _build_classblock_call(P, B, K, N1, N2, *, weight_buffers, allow_x_fusion):
    """Build the pallas_call for (P,B,K) bf16 inputs / (P,K,N1),(P,N1,N2) bf16 weights."""
    def wspec(shape, imap):
        # Deeper pipelining on the dominant weight streams so successive per-part
        # DMAs queue back-to-back (per-step compute is tiny vs. weight DMA time).
        if weight_buffers and weight_buffers > 2:
            return pl.BlockSpec(shape, imap, pipeline_mode=pl.Buffered(weight_buffers))
        return pl.BlockSpec(shape, imap)

    in_specs = [
        pl.BlockSpec((1, B, K),   lambda p: (p, 0, 0)),    # x for part p
        wspec((1, K, N1),         lambda p: (p, 0, 0)),    # W1 (BN-folded)
        pl.BlockSpec((1, 1, N1),  lambda p: (p, 0, 0)),    # b1 (BN-folded)
        wspec((1, N1, N2),        lambda p: (p, 0, 0)),    # W2
        pl.BlockSpec((1, 1, N2),  lambda p: (p, 0, 0)),    # b2
    ]
    out_specs = (pl.BlockSpec((1, B, N2), lambda p: (p, 0, 0)),
                 pl.BlockSpec((1, B, N1), lambda p: (p, 0, 0)))

    cp_kwargs = dict(dimension_semantics=("parallel",))     # parts are independent
    if allow_x_fusion:
        # Let XLA fuse the (B,K,P)->(P,B,K) transpose + bf16 cast into the x operand DMA.
        cp_kwargs["allow_input_fusion"] = [True, False, False, False, False]

    flops = 2 * P * B * (K * N1 + N1 * N2)
    bytes_accessed = (P * B * K * 2 + P * K * N1 * 2 + P * N1 * N2 * 2
                      + P * N1 * 4 + P * N2 * 4
                      + P * B * (N1 + N2) * 4)

    return pl.pallas_call(
        _classblock_kernel,
        out_shape=(jax.ShapeDtypeStruct((P, B, N2), jnp.float32),
                   jax.ShapeDtypeStruct((P, B, N1), jnp.float32)),
        grid=(P,),
        in_specs=in_specs,
        out_specs=out_specs,
        compiler_params=pltpu.CompilerParams(**cp_kwargs),
        cost_estimate=pl.CostEstimate(flops=flops, transcendentals=P * B,
                                      bytes_accessed=bytes_accessed),
    )


# ------------------------------ module wrapper -------------------------------

def classifier_forward(params, x, feat_all, out_all, *,
                       weight_buffers=3, allow_x_fusion=True):
    """Matches classifier.forward(x, feat_all, out_all). x: (B, 1024, num_part) f32."""
    start_point = len(feat_all)
    class_num = params['class_num']
    w1, b1, w2, b2 = params['w1'], params['b1'], params['w2'], params['b2']
    P, K, N1 = w1.shape
    N2 = w2.shape[-1]
    B = x.shape[0]

    call = _build_classblock_call(P, B, K, N1, N2,
                                  weight_buffers=weight_buffers,
                                  allow_x_fusion=allow_x_fusion)

    @jax.jit
    def fwd(x, w1, b1, w2, b2):
        # (B, C, P) -> (P, B, C) bf16; inside the jit so it can fuse into the
        # pallas_call operand DMA (allow_input_fusion) instead of a standalone kernel.
        x_parts = jnp.transpose(x, (2, 0, 1)).astype(jnp.bfloat16)
        out, feat = call(x_parts, w1, b1, w2, b2)
        out = out[..., :class_num]   # no-op when class_num is already a multiple of 128
        # Per-part slicing stays inside this single jitted program (one dispatch).
        return (tuple(feat[i] for i in range(P)), tuple(out[i] for i in range(P)))

    feats, outs = fwd(x, w1, b1, w2, b2)
    for i in range(P):
        feat_all[start_point + i] = feats[i]
        out_all[start_point + i] = outs[i]
    return feat_all, out_all


# --------------------------- deterministic params ----------------------------

def init_params(key, num_part, class_num, input_dim=1024, num_bottleneck=512):
    """Init mirroring the PyTorch module (inference):
       Linear1: kaiming_normal(fan_out), bias 0; BN1d: gamma~N(1,0.01), beta 0,
       random running stats, folded (eval mode) into Linear1;
       classifier Linear: normal(std=0.001), bias 0."""
    n2p = _round_up(class_num, 128)   # keep the classifier output lane-dense
    keys = jax.random.split(key, num_part)
    eps = 1e-5
    w1s, b1s, w2s, b2s = [], [], [], []
    for i in range(num_part):
        k = jax.random.split(keys[i], 5)
        w1 = jax.random.normal(k[0], (input_dim, num_bottleneck), jnp.float32) \
             * np.sqrt(2.0 / num_bottleneck)                       # kaiming fan_out
        b1 = jnp.zeros((num_bottleneck,), jnp.float32)
        gamma = 1.0 + 0.01 * jax.random.normal(k[1], (num_bottleneck,), jnp.float32)
        beta = jnp.zeros((num_bottleneck,), jnp.float32)
        mean = 0.1 * jax.random.normal(k[2], (num_bottleneck,), jnp.float32)
        var = 1.0 + 0.1 * jax.random.uniform(k[3], (num_bottleneck,), jnp.float32)
        scale = gamma / jnp.sqrt(var + eps)
        # fold eval-mode BN into the linear: BN(x@W1 + b1) = x@(W1*scale) + ((b1-mean)*scale + beta)
        w1f = w1 * scale[None, :]
        b1f = (b1 - mean) * scale + beta
        w2 = 0.001 * jax.random.normal(k[4], (num_bottleneck, class_num), jnp.float32)
        b2 = jnp.zeros((class_num,), jnp.float32)
        if n2p != class_num:
            w2 = jnp.pad(w2, ((0, 0), (0, n2p - class_num)))
            b2 = jnp.pad(b2, ((0, n2p - class_num),))
        w1s.append(w1f); b1s.append(b1f); w2s.append(w2); b2s.append(b2)
    return {
        'w1': jnp.stack(w1s).astype(jnp.bfloat16),      # (P, 1024, 512)
        'b1': jnp.stack(b1s)[:, None, :],               # (P, 1, 512) f32
        'w2': jnp.stack(w2s).astype(jnp.bfloat16),      # (P, 512, N2p)
        'b2': jnp.stack(b2s)[:, None, :],               # (P, 1, N2p) f32
        'class_num': class_num,
    }


# ------------------------------ pure-JAX reference ---------------------------

def reference_forward(params, x):
    """Plain-JAX reference with the same bf16 matmul casts (inference semantics)."""
    num_part = params['w1'].shape[0]
    class_num = params['class_num']
    outs, feats = [], []
    for i in range(num_part):
        xi = x[:, :, i].astype(jnp.bfloat16)
        feat = jnp.dot(xi, params['w1'][i],
                       preferred_element_type=jnp.float32) + params['b1'][i]
        logits = jnp.dot(feat.astype(jnp.bfloat16), params['w2'][i],
                         preferred_element_type=jnp.float32) + params['b2'][i]
        norm = jnp.sqrt(jnp.sum(feat * feat, axis=1, keepdims=True) + 1e-12)
        outs.append(logits[:, :class_num])
        feats.append(feat / norm)
    return feats, outs


# ----------------------------------- main ------------------------------------

if __name__ == "__main__":
    key = jax.random.PRNGKey(0)
    pkey, xkey = jax.random.split(key)

    num_part, class_num = 4, 128      # small, lane-dense classifier head; even P for megacore
    batch, input_dim = 8, 1024        # input_dim = 1024 is fixed by the module

    params = init_params(pkey, num_part, class_num)
    # x: (B, 1024, num_part) — the module indexes x[:, :, i] per part.
    x = jax.random.normal(xkey, (batch, input_dim, num_part), jnp.float32)

    try:
        feat_all, out_all = classifier_forward(params, x, {}, {},
                                               weight_buffers=3, allow_x_fusion=True)
        jax.block_until_ready(out_all[num_part - 1])
        jax.block_until_ready(feat_all[num_part - 1])
    except Exception:
        # Fallback to the baseline configuration (default 2-deep buffering, no
        # operand fusion), which is known to compile and run cleanly.
        feat_all, out_all = classifier_forward(params, x, {}, {},
                                               weight_buffers=0, allow_x_fusion=False)
        jax.block_until_ready(out_all[num_part - 1])
        jax.block_until_ready(feat_all[num_part - 1])

    # shape / sanity checks
    for i in range(num_part):
        assert out_all[i].shape == (batch, class_num), out_all[i].shape
        assert feat_all[i].shape == (batch, 512), feat_all[i].shape
        assert bool(jnp.all(jnp.isfinite(out_all[i])))
        assert bool(jnp.all(jnp.isfinite(feat_all[i])))
        norms = jnp.sqrt(jnp.sum(feat_all[i] ** 2, axis=1))
        assert bool(jnp.all(jnp.abs(norms - 1.0) < 1e-2)), norms   # unit-norm features

    # numerical check against the pure-JAX reference
    feats_ref, outs_ref = reference_forward(params, x)
    for i in range(num_part):
        np.testing.assert_allclose(np.asarray(out_all[i]), np.asarray(outs_ref[i]),
                                   rtol=2e-2, atol=2e-2)
        np.testing.assert_allclose(np.asarray(feat_all[i]), np.asarray(feats_ref[i]),
                                   rtol=2e-2, atol=2e-2)

    print("KERNEL_OK")
</pallas_src>

<mosaic_0001>
module attributes {stable_mosaic.version = 11 : i64} {
  func.func @_classblock_kernel(%arg0: i32, %arg1: memref<1x8x1024xbf16, #tpu.memory_space<vmem>>, %arg2: memref<1x1024x512xbf16, #tpu.memory_space<vmem>>, %arg3: memref<1x1x512xf32, #tpu.memory_space<vmem>>, %arg4: memref<1x512x128xbf16, #tpu.memory_space<vmem>>, %arg5: memref<1x1x128xf32, #tpu.memory_space<vmem>>, %arg6: memref<1x8x128xf32, #tpu.memory_space<vmem>>, %arg7: memref<1x8x512xf32, #tpu.memory_space<vmem>>) attributes {dimension_semantics = [#tpu.dimension_semantics<parallel>], iteration_bounds = array<i64: 4>, scalar_prefetch = 0 : i64, scratch_operands = 0 : i64, tpu.core_type = #tpu.core_type<tc>, window_params = [{transform_indices = @transform_0, window_bounds = array<i64: 1, 8, 1024>}, {transform_indices = @transform_1, window_bounds = array<i64: 1, 1024, 512>}, {transform_indices = @transform_2, window_bounds = array<i64: 1, 1, 512>}, {transform_indices = @transform_3, window_bounds = array<i64: 1, 512, 128>}, {transform_indices = @transform_4, window_bounds = array<i64: 1, 1, 128>}, {transform_indices = @transform_5, window_bounds = array<i64: 1, 8, 128>}, {transform_indices = @transform_6, window_bounds = array<i64: 1, 8, 512>}]} {
    %c0 = arith.constant 0 : index
    %c0_0 = arith.constant 0 : index
    %c0_1 = arith.constant 0 : index
    %0 = vector.load %arg1[%c0, %c0_0, %c0_1] : memref<1x8x1024xbf16, #tpu.memory_space<vmem>>, vector<1x8x1024xbf16>
    %1 = vector.shape_cast %0 : vector<1x8x1024xbf16> to vector<8x1024xbf16>
    %c0_2 = arith.constant 0 : index
    %c0_3 = arith.constant 0 : index
    %c0_4 = arith.constant 0 : index
    %2 = vector.load %arg2[%c0_2, %c0_3, %c0_4] : memref<1x1024x512xbf16, #tpu.memory_space<vmem>>, vector<1x1024x512xbf16>
    %3 = vector.shape_cast %2 : vector<1x1024x512xbf16> to vector<1024x512xbf16>
    %c0_5 = arith.constant 0 : index
    %c0_6 = arith.constant 0 : index
    %c0_7 = arith.constant 0 : index
    %4 = vector.load %arg4[%c0_5, %c0_6, %c0_7] : memref<1x512x128xbf16, #tpu.memory_space<vmem>>, vector<1x512x128xbf16>
    %5 = vector.shape_cast %4 : vector<1x512x128xbf16> to vector<512x128xbf16>
    %cst = arith.constant dense<0.000000e+00> : vector<8x512xf32>
    %6 = tpu.matmul %1, %3, %cst {dimension_numbers = #tpu.dot_dimension_numbers<[1], [0], [0], [1], [0, 0, 1, 1], [], []>} : vector<8x1024xbf16>, vector<1024x512xbf16>, vector<8x512xf32> -> vector<8x512xf32>
    %c0_8 = arith.constant 0 : index
    %c0_9 = arith.constant 0 : index
    %c0_10 = arith.constant 0 : index
    %7 = vector.load %arg3[%c0_8, %c0_9, %c0_10] : memref<1x1x512xf32, #tpu.memory_space<vmem>>, vector<1x1x512xf32>
    %8 = vector.shape_cast %7 : vector<1x1x512xf32> to vector<1x512xf32>
    %9 = vector.broadcast %8 : vector<1x512xf32> to vector<8x512xf32>
    %10 = arith.addf %6, %9 : vector<8x512xf32>
    %11 = arith.truncf %10 : vector<8x512xf32> to vector<8x512xbf16>
    %cst_11 = arith.constant dense<0.000000e+00> : vector<8x128xf32>
    %12 = tpu.matmul %11, %5, %cst_11 {dimension_numbers = #tpu.dot_dimension_numbers<[1], [0], [0], [1], [0, 0, 1, 1], [], []>} : vector<8x512xbf16>, vector<512x128xbf16>, vector<8x128xf32> -> vector<8x128xf32>
    %c0_12 = arith.constant 0 : index
    %c0_13 = arith.constant 0 : index
    %c0_14 = arith.constant 0 : index
    %13 = vector.load %arg5[%c0_12, %c0_13, %c0_14] : memref<1x1x128xf32, #tpu.memory_space<vmem>>, vector<1x1x128xf32>
    %14 = vector.shape_cast %13 : vector<1x1x128xf32> to vector<1x128xf32>
    %15 = vector.broadcast %14 : vector<1x128xf32> to vector<8x128xf32>
    %16 = arith.addf %12, %15 : vector<8x128xf32>
    %c0_15 = arith.constant 0 : index
    %c0_16 = arith.constant 0 : index
    %c0_17 = arith.constant 0 : index
    %17 = vector.load %arg6[%c0_15, %c0_16, %c0_17] : memref<1x8x128xf32, #tpu.memory_space<vmem>>, vector<1x8x128xf32>
    %18 = vector.shape_cast %17 : vector<1x8x128xf32> to vector<8x128xf32>
    %19 = vector.shape_cast %16 : vector<8x128xf32> to vector<1x8x128xf32>
    tpu.vector_store %arg6[%c0_15, %c0_16, %c0_17], %19 {strides = array<i32>} : memref<1x8x128xf32, #tpu.memory_space<vmem>>, vector<1x8x128xf32>,
    %20 = arith.mulf %10, %10 : vector<8x512xf32>
    %cst_18 = arith.constant dense<0.000000e+00> : vector<8xf32>
    %21 = vector.multi_reduction <add>, %20, %cst_18 [1] : vector<8x512xf32> to vector<8xf32>
    %22 = vector.shape_cast %21 : vector<8xf32> to vector<8x1xf32>
    %cst_19 = arith.constant 9.99999996E-13 : f32
    %23 = vector.broadcast %cst_19 : f32 to vector<8x1xf32>
    %24 = arith.addf %22, %23 : vector<8x1xf32>
    %25 = math.rsqrt %24 : vector<8x1xf32>
    %26 = vector.broadcast %25 : vector<8x1xf32> to vector<8x512xf32>
    %27 = arith.mulf %10, %26 : vector<8x512xf32>
    %c0_20 = arith.constant 0 : index
    %c0_21 = arith.constant 0 : index
    %c0_22 = arith.constant 0 : index
    %28 = vector.load %arg7[%c0_20, %c0_21, %c0_22] : memref<1x8x512xf32, #tpu.memory_space<vmem>>, vector<1x8x512xf32>
    %29 = vector.shape_cast %28 : vector<1x8x512xf32> to vector<8x512xf32>
    %30 = vector.shape_cast %27 : vector<8x512xf32> to vector<1x8x512xf32>
    tpu.vector_store %arg7[%c0_20, %c0_21, %c0_22], %30 {strides = array<i32>} : memref<1x8x512xf32, #tpu.memory_space<vmem>>, vector<1x8x512xf32>,
    return
  }
  func.func @transform_0(%arg0: i32) -> (i32, i32, i32) {
    %c0_i32 = arith.constant 0 : i32
    %c0_i32_0 = arith.constant 0 : i32
    %c0_i32_1 = arith.constant 0 : i32
    return %arg0, %c0_i32, %c0_i32_0 : i32, i32, i32
  }
  func.func @transform_1(%arg0: i32) -> (i32, i32, i32) {
    %c0_i32 = arith.constant 0 : i32
    %c0_i32_0 = arith.constant 0 : i32
    %c0_i32_1 = arith.constant 0 : i32
    return %arg0, %c0_i32, %c0_i32_0 : i32, i32, i32
  }
  func.func @transform_2(%arg0: i32) -> (i32, i32, i32) {
    %c0_i32 = arith.constant 0 : i32
    %c0_i32_0 = arith.constant 0 : i32
    %c0_i32_1 = arith.constant 0 : i32
    return %arg0, %c0_i32, %c0_i32_0 : i32, i32, i32
  }
  func.func @transform_3(%arg0: i32) -> (i32, i32, i32) {
    %c0_i32 = arith.constant 0 : i32
    %c0_i32_0 = arith.constant 0 : i32
    %c0_i32_1 = arith.constant 0 : i32
    return %arg0, %c0_i32, %c0_i32_0 : i32, i32, i32
  }
  func.func @transform_4(%arg0: i32) -> (i32, i32, i32) {
    %c0_i32 = arith.constant 0 : i32
    %c0_i32_0 = arith.constant 0 : i32
    %c0_i32_1 = arith.constant 0 : i32
    return %arg0, %c0_i32, %c0_i32_0 : i32, i32, i32
  }
  func.func @transform_5(%arg0: i32) -> (i32, i32, i32) {
    %c0_i32 = arith.constant 0 : i32
    %c0_i32_0 = arith.constant 0 : i32
    %c0_i32_1 = arith.constant 0 : i32
    return %arg0, %c0_i32, %c0_i32_0 : i32, i32, i32
  }
  func.func @transform_6(%arg0: i32) -> (i32, i32, i32) {
    %c0_i32 = arith.constant 0 : i32
    %c0_i32_0 = arith.constant 0 : i32
    %c0_i32_1 = arith.constant 0 : i32
    return %arg0, %c0_i32, %c0_i32_0 : i32, i32, i32
  }
}

</mosaic_0001>

<llo_original>
// kernel: fwd.1
$region0: #{fwd.1}
  #allocation0 [shape = 'u32[]', space=smem, size = 0x4, offset = 0x4, fixed_abs, tag = 'smem constant byte address 0x4 - core index']
  #allocation1 [shape = 'u32[72,128]{1,0:T(1,128)}', space=vmem, size = 0x9000, scoped, tag = 'internal scratch']
  %s0 = inlined_call_operand.vmem [shape: bf16[4,8,1024], index: 0, kind: input, shape index: {}]
  %s1 = inlined_call_operand.hbm [shape: bf16[4,1024,512], index: 1, kind: input, shape index: {}]
  %s2 = inlined_call_operand.hbm [shape: f32[4,1,512], index: 2, kind: input, shape index: {}]
  %s3 = inlined_call_operand.hbm [shape: bf16[4,512,128], index: 3, kind: input, shape index: {}]
  %s4 = inlined_call_operand.hbm [shape: f32[4,1,128], index: 4, kind: input, shape index: {}]
  %s5 = inlined_call_operand.vmem [shape: f32[4,8,128], index: 5, kind: output, shape index: {0}]
  %s6 = inlined_call_operand.vmem [shape: f32[4,8,512], index: 6, kind: output, shape index: {1}]
  %7 = xla_tuple %s5, %s6
  %s8 = sld [smem:[#allocation0]]
  $region77: #{fwd.1} parent=0
    _
  %s10 = ssub.s32 1, %s8
  %s11 = scalar_select 0, %s10, %s8
  $region1: #{fwd.1} parent=0
    #allocation2 [shape = 'u8[2097152]{0}', space=vmem, size = 0x200000, scoped, tag = 'input window, operand 1']
    #allocation3 [shape = 's32[2]{0}', space=sflag, size = 0x8, scoped, tag = 'scoped memory for fwd.1']
    #allocation4 [shape = 'u8[4096]{0}', space=vmem, size = 0x1000, scoped, tag = 'input window, operand 2']
    #allocation5 [shape = 's32[2]{0}', space=sflag, size = 0x8, scoped, tag = 'scoped memory for fwd.1']
    #allocation6 [shape = 'u8[262144]{0}', space=vmem, size = 0x40000, scoped, tag = 'input window, operand 3']
    #allocation7 [shape = 'u8[1024]{0}', space=vmem, size = 0x400, scoped, tag = 'input window, operand 4']
    #allocation8 [shape = 's32[2]{0}', space=sflag, size = 0x8, scoped, tag = 'scoped memory for fwd.1']
    %12 = vsyncpa [#allocation3], 0
    %s13 = scalar_lea.sflag [#allocation3], 1
    %14 = vsyncpa %s13, 0
    %15 = vsyncpa [#allocation5], 0
    %s16 = scalar_lea.sflag [#allocation5], 1
    %17 = vsyncpa %s16, 0
    %18 = vsyncpa [#allocation8], 0
    %s19 = scalar_lea.sflag [#allocation8], 1
    %20 = vsyncpa %s19, 0
    loop: start=0, step=1, limit=6
    $region2: #{fwd.1} parent=1 // loop_pre_header
      _
    $region3: #{fwd.1} parent=1 // loop_header
      %s22 = sphi 0, %s26
      %p23 = scmp.ge.s32.totalorder %s22, 6
      %s32 = sphi 0, %s34
      %s35 = sphi 0, %s32
      %s36 = sphi 0, %s35
      %s52 = sphi 0, %s36
      %s58 = sphi 0, %s60
      %s61 = sphi 0, %s58
      %s62 = sphi 0, %s61
      %s78 = sphi 0, %s62
      %s84 = sphi 0, %s86
      %s87 = sphi 0, %s84
      %s88 = sphi 0, %s87
      %s104 = sphi 0, %s88
      %s110 = sphi 0, %s112
      %s113 = sphi 0, %s110
      %s114 = sphi 0, %s113
      %s130 = sphi 0, %s114
      %s136 = sphi 0, %s138
      %s139 = sphi 0, %s136
      %s140 = sphi 0, %s139
      %s156 = sphi 0, %s140
      %s162 = sphi 0, %s164
      %s165 = sphi 0, %s162
      %s166 = sphi 0, %s165
      %s182 = sphi 0, %s166
      %s188 = sphi 0, %s190
      %s191 = sphi 0, %s188
      %s192 = sphi 0, %s191
      %s208 = sphi 0, %s192
    $region4: #{fwd.1} parent=1 // loop_header_branch
      %25 = sbr.rel (%p23) target = $region8
    $region5: #{fwd.1} parent=1 // loop_body
      %s27 = ssub.s32 %s22, 1
      %s28 = ssub.s32 %s22, 2
      %s29 = sadd.s32 %s22, 1
      %s30 = ssub.s32 %s22, %s29
      %p31 = scmp.eq.s32.totalorder %s30, 0
      %s33 = sadd.s32 %s32, 1
      %s34 = scalar_select %p31, %s32, %s33
      %p37 = pneg %p31
      %p38 = scmp.eq.s32.totalorder %s22, 3
      %p39 = por %p37, %p38
      %p40 = scmp.ne.s32.totalorder %s32, %s35
      %p41 = scmp.eq.s32.totalorder %s22, 0
      %p42 = por %p40, %p41
      %p43 = scmp.ne.s32.totalorder %s32, %s35
      %p44 = scmp.eq.s32.totalorder %s27, 3
      %p45 = por %p43, %p44
      %p46 = scmp.ne.s32.totalorder %s35, %s36
      %p47 = scmp.eq.s32.totalorder %s27, 0
      %p48 = por %p46, %p47
      %p49 = scmp.ne.s32.totalorder %s35, %s36
      %p50 = scmp.eq.s32.totalorder %s28, 3
      %p51 = por %p49, %p50
      %p53 = scmp.ne.s32.totalorder %s36, %s52
      %p54 = scmp.eq.s32.totalorder %s28, 0
      %p55 = por %p53, %p54
      %s56 = ssub.s32 %s22, %s29
      %p57 = scmp.eq.s32.totalorder %s56, 0
      %s59 = sadd.s32 %s58, 1
      %s60 = scalar_select %p57, %s58, %s59
      %p63 = pneg %p57
      %p64 = scmp.eq.s32.totalorder %s22, 3
      %p65 = por %p63, %p64
      %p66 = scmp.ne.s32.totalorder %s58, %s61
      %p67 = scmp.eq.s32.totalorder %s22, 0
      %p68 = por %p66, %p67
      %p69 = scmp.ne.s32.totalorder %s58, %s61
      %p70 = scmp.eq.s32.totalorder %s27, 3
      %p71 = por %p69, %p70
      %p72 = scmp.ne.s32.totalorder %s61, %s62
      %p73 = scmp.eq.s32.totalorder %s27, 0
      %p74 = por %p72, %p73
      %p75 = scmp.ne.s32.totalorder %s61, %s62
      %p76 = scmp.eq.s32.totalorder %s28, 3
      %p77 = por %p75, %p76
      %p79 = scmp.ne.s32.totalorder %s62, %s78
      %p80 = scmp.eq.s32.totalorder %s28, 0
      %p81 = por %p79, %p80
      %s82 = ssub.s32 %s22, %s29
      %p83 = scmp.eq.s32.totalorder %s82, 0
      %s85 = sadd.s32 %s84, 1
      %s86 = scalar_select %p83, %s84, %s85
      %p89 = pneg %p83
      %p90 = scmp.eq.s32.totalorder %s22, 3
      %p91 = por %p89, %p90
      %p92 = scmp.ne.s32.totalorder %s84, %s87
      %p93 = scmp.eq.s32.totalorder %s22, 0
      %p94 = por %p92, %p93
      %p95 = scmp.ne.s32.totalorder %s84, %s87
      %p96 = scmp.eq.s32.totalorder %s27, 3
      %p97 = por %p95, %p96
      %p98 = scmp.ne.s32.totalorder %s87, %s88
      %p99 = scmp.eq.s32.totalorder %s27, 0
      %p100 = por %p98, %p99
      %p101 = scmp.ne.s32.totalorder %s87, %s88
      %p102 = scmp.eq.s32.totalorder %s28, 3
      %p103 = por %p101, %p102
      %p105 = scmp.ne.s32.totalorder %s88, %s104
      %p106 = scmp.eq.s32.totalorder %s28, 0
      %p107 = por %p105, %p106
      %s108 = ssub.s32 %s22, %s29
      %p109 = scmp.eq.s32.totalorder %s108, 0
      %s111 = sadd.s32 %s110, 1
      %s112 = scalar_select %p109, %s110, %s111
      %p115 = pneg %p109
      %p116 = scmp.eq.s32.totalorder %s22, 3
      %p117 = por %p115, %p116
      %p118 = scmp.ne.s32.totalorder %s110, %s113
      %p119 = scmp.eq.s32.totalorder %s22, 0
      %p120 = por %p118, %p119
      %p121 = scmp.ne.s32.totalorder %s110, %s113
      %p122 = scmp.eq.s32.totalorder %s27, 3
      %p123 = por %p121, %p122
      %p124 = scmp.ne.s32.totalorder %s113, %s114
      %p125 = scmp.eq.s32.totalorder %s27, 0
      %p126 = por %p124, %p125
      %p127 = scmp.ne.s32.totalorder %s113, %s114
      %p128 = scmp.eq.s32.totalorder %s28, 3
      %p129 = por %p127, %p128
      %p131 = scmp.ne.s32.totalorder %s114, %s130
      %p132 = scmp.eq.s32.totalorder %s28, 0
      %p133 = por %p131, %p132
      %s134 = ssub.s32 %s22, %s29
      %p135 = scmp.eq.s32.totalorder %s134, 0
      %s137 = sadd.s32 %s136, 1
      %s138 = scalar_select %p135, %s136, %s137
      %p141 = pneg %p135
      %p142 = scmp.eq.s32.totalorder %s22, 3
      %p143 = por %p141, %p142
      %p144 = scmp.ne.s32.totalorder %s136, %s139
      %p145 = scmp.eq.s32.totalorder %s22, 0
      %p146 = por %p144, %p145
      %p147 = scmp.ne.s32.totalorder %s136, %s139
      %p148 = scmp.eq.s32.totalorder %s27, 3
      %p149 = por %p147, %p148
      %p150 = scmp.ne.s32.totalorder %s139, %s140
      %p151 = scmp.eq.s32.totalorder %s27, 0
      %p152 = por %p150, %p151
      %p153 = scmp.ne.s32.totalorder %s139, %s140
      %p154 = scmp.eq.s32.totalorder %s28, 3
      %p155 = por %p153, %p154
      %p157 = scmp.ne.s32.totalorder %s140, %s156
      %p158 = scmp.eq.s32.totalorder %s28, 0
      %p159 = por %p157, %p158
      %s160 = ssub.s32 %s22, %s29
      %p161 = scmp.eq.s32.totalorder %s160, 0
      %s163 = sadd.s32 %s162, 1
      %s164 = scalar_select %p161, %s162, %s163
      %p167 = pneg %p161
      %p168 = scmp.eq.s32.totalorder %s22, 3
      %p169 = por %p167, %p168
      %p170 = scmp.ne.s32.totalorder %s162, %s165
      %p171 = scmp.eq.s32.totalorder %s22, 0
      %p172 = por %p170, %p171
      %p173 = scmp.ne.s32.totalorder %s162, %s165
      %p174 = scmp.eq.s32.totalorder %s27, 3
      %p175 = por %p173, %p174
      %p176 = scmp.ne.s32.totalorder %s165, %s166
      %p177 = scmp.eq.s32.totalorder %s27, 0
      %p178 = por %p176, %p177
      %p179 = scmp.ne.s32.totalorder %s165, %s166
      %p180 = scmp.eq.s32.totalorder %s28, 3
      %p181 = por %p179, %p180
      %p183 = scmp.ne.s32.totalorder %s166, %s182
      %p184 = scmp.eq.s32.totalorder %s28, 0
      %p185 = por %p183, %p184
      %s186 = ssub.s32 %s22, %s29
      %p187 = scmp.eq.s32.totalorder %s186, 0
      %s189 = sadd.s32 %s188, 1
      %s190 = scalar_select %p187, %s188, %s189
      %p193 = pneg %p187
      %p194 = scmp.eq.s32.totalorder %s22, 3
      %p195 = por %p193, %p194
      %p196 = scmp.ne.s32.totalorder %s188, %s191
      %p197 = scmp.eq.s32.totalorder %s22, 0
      %p198 = por %p196, %p197
      %p199 = scmp.ne.s32.totalorder %s188, %s191
      %p200 = scmp.eq.s32.totalorder %s27, 3
      %p201 = por %p199, %p200
      %p202 = scmp.ne.s32.totalorder %s191, %s192
      %p203 = scmp.eq.s32.totalorder %s27, 0
      %p204 = por %p202, %p203
      %p205 = scmp.ne.s32.totalorder %s191, %s192
      %p206 = scmp.eq.s32.totalorder %s28, 3
      %p207 = por %p205, %p206
      %p209 = scmp.ne.s32.totalorder %s192, %s208
      %p210 = scmp.eq.s32.totalorder %s28, 0
      %p211 = por %p209, %p210
      %p212 = scmp.le.s32.totalorder 1, %s22
      %p213 = scmp.lt.s32.totalorder %s22, 5
      %p214 = pnand %p212, %p213
      %p215 = pneg %p214
      // Predicated region
      $region9: #{fwd.1} parent=5 // pred_check
        _
      $region10: #{fwd.1} parent=5 // pred_check_branch
        %217 = sbr.rel (%p214) target = $region12
      $region11: #{fwd.1} parent=5 // pred_region
        %s218 = ssub.s32 %s22, 1
      $region12: #{fwd.1} parent=5 // pred_fallthru
        _
      %p219 = scmp.lt.s32.totalorder %s22, 4
      // Predicated region
      $region13: #{fwd.1} parent=5 // pred_check
        %p220 = pneg %p219
      $region14: #{fwd.1} parent=5 // pred_check_branch
        %222 = sbr.rel (%p220) target = $region16
      $region15: #{fwd.1} parent=5 // pred_region
        // Predicated region
        $region17: #{fwd.1} parent=15 // pred_check
          %p223 = pneg %p42
        $region18: #{fwd.1} parent=15 // pred_check_branch
          %225 = sbr.rel (%p223) target = $region20
        $region19: #{fwd.1} parent=15 // pred_region
          %p226 = scmp.lt.s32.totalorder %s22, 3
          %s227 = scalar_select %p226, %s22, 3
          %s228 = smul.addr %s227, 8
          %s229 = smul.addr %s228, 4
          %s230 = scalar_lea.vmem %s0, %s229
        $region20: #{fwd.1} parent=15 // pred_fallthru
          _
        // Predicated region
        $region21: #{fwd.1} parent=15 // pred_check
          %p231 = pneg %p68
        $region22: #{fwd.1} parent=15 // pred_check_branch
          %233 = sbr.rel (%p231) target = $region24
        $region23: #{fwd.1} parent=15 // pred_region
          %s234 = sand.u32 %s58, 1
          %s235 = scalar_lea.sflag [#allocation3], %s234
          %s236 = sand.u32 %s58, 1
          %s237 = smul.addr %s236, 2048
          %s238 = scalar_lea.vmem [#allocation2], %s237
          %240 = vsyncadd %s235, 0
          %s241 = smul.addr %s22, 512
          %s242 = smul.addr %s241, 4
          %s243 = scalar_lea.hbm %s1, %s242
          %s244 = sshll.u32 %s243, 4
          %s245 = int_to_ptr.hbm [resolvable:$true] %s244
          %s246 = sshll.u32 %s238, 4
          %s247 = int_to_ptr.vmem [resolvable:$true] %s246
          %252 = dma.hbm_to_vmem [thread:$0]  %s245, 32768, %s247, %s235, 256, 256, 16
        $region24: #{fwd.1} parent=15 // pred_fallthru
          _
        // Predicated region
        $region25: #{fwd.1} parent=15 // pred_check
          %p253 = pneg %p94
        $region26: #{fwd.1} parent=15 // pred_check_branch
          %255 = sbr.rel (%p253) target = $region28
        $region27: #{fwd.1} parent=15 // pred_region
          %s256 = sand.u32 %s22, 1
          %s257 = scalar_lea.sflag [#allocation5], %s256
          %s258 = sand.u32 %s84, 1
          %s259 = smul.addr %s258, 4
          %s260 = scalar_lea.vmem [#allocation4], %s259
          %262 = vsyncadd %s257, 0
          %s263 = smul.addr %s22, 4
          %s264 = scalar_lea.hbm %s2, %s263
          %s266 = sshll.u32 %s264, 4
          %s267 = int_to_ptr.hbm [resolvable:$true] %s266
          %s268 = sshll.u32 %s260, 4
          %s269 = int_to_ptr.vmem [resolvable:$true] %s268
          %271 = dma.hbm_to_vmem [thread:$0]  %s267, 64, %s269, %s257
        $region28: #{fwd.1} parent=15 // pred_fallthru
          _
        // Predicated region
        $region29: #{fwd.1} parent=15 // pred_check
          %p272 = pneg %p120
        $region30: #{fwd.1} parent=15 // pred_check_branch
          %274 = sbr.rel (%p272) target = $region32
        $region31: #{fwd.1} parent=15 // pred_region
          %s275 = sand.u32 %s22, 1
          %s276 = scalar_lea.sflag [#allocation5], %s275
          %s277 = sand.u32 %s110, 1
          %s278 = smul.addr %s277, 256
          %s279 = scalar_lea.vmem [#allocation6], %s278
          %281 = vsyncadd %s276, 0
          %s282 = smul.addr %s22, 64
          %s283 = smul.addr %s282, 4
          %s284 = scalar_lea.hbm %s3, %s283
          %s285 = sshll.u32 %s284, 4
          %s286 = int_to_ptr.hbm [resolvable:$true] %s285
          %s287 = sshll.u32 %s279, 4
          %s288 = int_to_ptr.vmem [resolvable:$true] %s287
          %293 = dma.hbm_to_vmem [thread:$0]  %s286, 4096, %s288, %s276, 64, 64, 4
        $region32: #{fwd.1} parent=15 // pred_fallthru
          _
        // Predicated region
        $region33: #{fwd.1} parent=15 // pred_check
          %p294 = pneg %p146
        $region34: #{fwd.1} parent=15 // pred_check_branch
          %296 = sbr.rel (%p294) target = $region36
        $region35: #{fwd.1} parent=15 // pred_region
          %s297 = sand.u32 %s136, 1
          %s298 = scalar_lea.sflag [#allocation8], %s297
          %s299 = sand.u32 %s136, 1
          %s300 = scalar_lea.vmem [#allocation7], %s299
          %302 = vsyncadd %s298, 0
          %s303 = scalar_lea.hbm %s4, %s22
          %s305 = sshll.u32 %s303, 4
          %s306 = int_to_ptr.hbm [resolvable:$true] %s305
          %s307 = sshll.u32 %s300, 4
          %s308 = int_to_ptr.vmem [resolvable:$true] %s307
          %310 = dma.hbm_to_vmem [thread:$0]  %s306, 16, %s308, %s298
        $region36: #{fwd.1} parent=15 // pred_fallthru
          _
      $region16: #{fwd.1} parent=5 // pred_fallthru
        _
      %p311 = scmp.le.s32.totalorder 1, %s22
      %p312 = scmp.lt.s32.totalorder %s22, 5
      %p313 = pnand %p311, %p312
      %p314 = pneg %p313
      // Predicated region
      $region37: #{fwd.1} parent=5 // pred_check
        _
      $region38: #{fwd.1} parent=5 // pred_check_branch
        %316 = sbr.rel (%p313) target = $region40
      $region39: #{fwd.1} parent=5 // pred_region
        %s317 = ssub.s32 %s22, 1
        %s318 = sand.u32 %s61, 1
        %s319 = scalar_lea.sflag [#allocation3], %s318
        %s320 = sand.u32 %s61, 1
        %s321 = smul.addr %s320, 2048
        %s322 = scalar_lea.vmem [#allocation2], %s321
        // Predicated region
        $region41: #{fwd.1} parent=39 // pred_check
          %p323 = pneg %p74
        $region42: #{fwd.1} parent=39 // pred_check_branch
          %325 = sbr.rel (%p323) target = $region44
        $region43: #{fwd.1} parent=39 // pred_region
          %327 = dma.done %s319, 32768
        $region44: #{fwd.1} parent=39 // pred_fallthru
          _
        %s328 = sand.u32 %s27, 1
        %s329 = scalar_lea.sflag [#allocation5], %s328
        %s330 = sand.u32 %s87, 1
        %s331 = smul.addr %s330, 4
        %s332 = scalar_lea.vmem [#allocation4], %s331
        // Predicated region
        $region45: #{fwd.1} parent=39 // pred_check
          %p333 = pneg %p100
        $region46: #{fwd.1} parent=39 // pred_check_branch
          %335 = sbr.rel (%p333) target = $region48
        $region47: #{fwd.1} parent=39 // pred_region
          %337 = dma.done %s329, 64
        $region48: #{fwd.1} parent=39 // pred_fallthru
          _
        %s338 = sand.u32 %s27, 1
        %s339 = scalar_lea.sflag [#allocation5], %s338
        %s340 = sand.u32 %s113, 1
        %s341 = smul.addr %s340, 256
        %s342 = scalar_lea.vmem [#allocation6], %s341
        // Predicated region
        $region49: #{fwd.1} parent=39 // pred_check
          %p343 = pneg %p126
        $region50: #{fwd.1} parent=39 // pred_check_branch
          %345 = sbr.rel (%p343) target = $region52
        $region51: #{fwd.1} parent=39 // pred_region
          %347 = dma.done %s339, 4096
        $region52: #{fwd.1} parent=39 // pred_fallthru
          _
        %s348 = sand.u32 %s139, 1
        %s349 = scalar_lea.sflag [#allocation8], %s348
        %s350 = sand.u32 %s139, 1
        %s351 = scalar_lea.vmem [#allocation7], %s350
        // Predicated region
        $region53: #{fwd.1} parent=39 // pred_check
          %p352 = pneg %p152
        $region54: #{fwd.1} parent=39 // pred_check_branch
          %354 = sbr.rel (%p352) target = $region56
        $region55: #{fwd.1} parent=39 // pred_region
          %356 = dma.done %s349, 16
        $region56: #{fwd.1} parent=39 // pred_fallthru
          _
        %p357 = scmp.lt.s32.totalorder %s27, 3
        %s358 = scalar_select %p357, %s27, 3
        %s359 = smul.addr %s358, 8
        %s360 = smul.addr %s359, 4
        %s361 = scalar_lea.vmem %s0, %s360
        %p362 = pneg %p48
        %p363 = pneg %p45
        %s364 = sand.u32 %s61, 1
        %s365 = scalar_lea.sflag [#allocation3], %s364
        %s366 = sand.u32 %s61, 1
        %s367 = smul.addr %s366, 2048
        %s368 = scalar_lea.vmem [#allocation2], %s367
        %p369 = pneg %p74
        %p370 = pneg %p71
        %s371 = sand.u32 %s27, 1
        %s372 = scalar_lea.sflag [#allocation5], %s371
        %s373 = sand.u32 %s87, 1
        %s374 = smul.addr %s373, 4
        %s375 = scalar_lea.vmem [#allocation4], %s374
        %p376 = pneg %p100
        %p377 = pneg %p97
        %s378 = sand.u32 %s27, 1
        %s379 = scalar_lea.sflag [#allocation5], %s378
        %s380 = sand.u32 %s113, 1
        %s381 = smul.addr %s380, 256
        %s382 = scalar_lea.vmem [#allocation6], %s381
        %p383 = pneg %p126
        %p384 = pneg %p123
        %s385 = sand.u32 %s139, 1
        %s386 = scalar_lea.sflag [#allocation8], %s385
        %s387 = sand.u32 %s139, 1
        %s388 = scalar_lea.vmem [#allocation7], %s387
        %p389 = pneg %p152
        %p390 = pneg %p149
        %p391 = pneg %p178
        %p392 = pneg %p175
        %p393 = scmp.lt.s32.totalorder %s27, 3
        %s394 = scalar_select %p393, %s27, 3
        %s395 = smul.addr %s394, 8
        %s396 = scalar_lea.vmem %s5, %s395
        %p397 = pneg %p204
        %p398 = pneg %p201
        %p399 = scmp.lt.s32.totalorder %s27, 3
        %s400 = scalar_select %p399, %s27, 3
        %s401 = smul.addr %s400, 4
        %s402 = smul.addr %s401, 8
        %s403 = scalar_lea.vmem %s6, %s402
        %p404 = scmp.lt.s32.totalorder %s27, 3
        %s405 = scalar_select %p404, %s27, 3
        %s406 = smul.addr %s405, 8
        %s407 = smul.addr %s406, 4
        %s408 = scalar_lea.vmem %s0, %s407
        %p409 = scmp.lt.s32.totalorder %s27, 3
        %s410 = scalar_select %p409, %s27, 3
        %s411 = smul.addr %s410, 8
        %s412 = scalar_lea.vmem %s5, %s411
        %p413 = scmp.lt.s32.totalorder %s27, 3
        %s414 = scalar_select %p413, %s27, 3
        %s415 = smul.addr %s414, 4
        %s416 = smul.addr %s415, 8
        %s417 = scalar_lea.vmem %s6, %s416
        %v418 = vld [vmem:[%s408] sm:$0xff]
        %v419 = vld [vmem:[%s408 + $0x8] sm:$0xff]
        %v420 = vld [vmem:[%s408 + $0x10] sm:$0xff]
        %v421 = vld [vmem:[%s408 + $0x18] sm:$0xff]
        %v422 = vld [vmem:[%s322] sm:$0xff]
        %v423 = vld [vmem:[%s322 + $0x8] sm:$0xff]
        %v424 = vld [vmem:[%s322 + $0x10] sm:$0xff]
        %v425 = vld [vmem:[%s322 + $0x18] sm:$0xff]
        %v426 = vld [vmem:[%s322 + $0x20] sm:$0xff]
        %v427 = vld [vmem:[%s322 + $0x28] sm:$0xff]
        %v428 = vld [vmem:[%s322 + $0x30] sm:$0xff]
        %v429 = vld [vmem:[%s322 + $0x38] sm:$0xff]
        %v430 = vld [vmem:[%s322 + $0x40] sm:$0xff]
        %v431 = vld [vmem:[%s322 + $0x48] sm:$0xff]
        %v432 = vld [vmem:[%s322 + $0x50] sm:$0xff]
        %v433 = vld [vmem:[%s322 + $0x58] sm:$0xff]
        %v434 = vld [vmem:[%s322 + $0x60] sm:$0xff]
        %v435 = vld [vmem:[%s322 + $0x68] sm:$0xff]
        %v436 = vld [vmem:[%s322 + $0x70] sm:$0xff]
        %v437 = vld [vmem:[%s322 + $0x78] sm:$0xff]
        %v438 = vld [vmem:[%s322 + $0x80] sm:$0xff]
        %v439 = vld [vmem:[%s322 + $0x88] sm:$0xff]
        %v440 = vld [vmem:[%s322 + $0x90] sm:$0xff]
        %v441 = vld [vmem:[%s322 + $0x98] sm:$0xff]
        %v442 = vld [vmem:[%s322 + $0xa0] sm:$0xff]
        %v443 = vld [vmem:[%s322 + $0xa8] sm:$0xff]
        %v444 = vld [vmem:[%s322 + $0xb0] sm:$0xff]
        %v445 = vld [vmem:[%s322 + $0xb8] sm:$0xff]
        %v446 = vld [vmem:[%s322 + $0xc0] sm:$0xff]
        %v447 = vld [vmem:[%s322 + $0xc8] sm:$0xff]
        %v448 = vld [vmem:[%s322 + $0xd0] sm:$0xff]
        %v449 = vld [vmem:[%s322 + $0xd8] sm:$0xff]
        %v450 = vld [vmem:[%s322 + $0xe0] sm:$0xff]
        %v451 = vld [vmem:[%s322 + $0xe8] sm:$0xff]
        %v452 = vld [vmem:[%s322 + $0xf0] sm:$0xff]
        %v453 = vld [vmem:[%s322 + $0xf8] sm:$0xff]
        %v454 = vld [vmem:[%s322 + $0x100] sm:$0xff]
        %v455 = vld [vmem:[%s322 + $0x108] sm:$0xff]
        %v456 = vld [vmem:[%s322 + $0x110] sm:$0xff]
        %v457 = vld [vmem:[%s322 + $0x118] sm:$0xff]
        %v458 = vld [vmem:[%s322 + $0x120] sm:$0xff]
        %v459 = vld [vmem:[%s322 + $0x128] sm:$0xff]
        %v460 = vld [vmem:[%s322 + $0x130] sm:$0xff]
        %v461 = vld [vmem:[%s322 + $0x138] sm:$0xff]
        %v462 = vld [vmem:[%s322 + $0x140] sm:$0xff]
        %v463 = vld [vmem:[%s322 + $0x148] sm:$0xff]
        %v464 = vld [vmem:[%s322 + $0x150] sm:$0xff]
        %v465 = vld [vmem:[%s322 + $0x158] sm:$0xff]
        %v466 = vld [vmem:[%s322 + $0x160] sm:$0xff]
        %v467 = vld [vmem:[%s322 + $0x168] sm:$0xff]
        %v468 = vld [vmem:[%s322 + $0x170] sm:$0xff]
        %v469 = vld [vmem:[%s322 + $0x178] sm:$0xff]
        %v470 = vld [vmem:[%s322 + $0x180] sm:$0xff]
        %v471 = vld [vmem:[%s322 + $0x188] sm:$0xff]
        %v472 = vld [vmem:[%s322 + $0x190] sm:$0xff]
        %v473 = vld [vmem:[%s322 + $0x198] sm:$0xff]
        %v474 = vld [vmem:[%s322 + $0x1a0] sm:$0xff]
        %v475 = vld [vmem:[%s322 + $0x1a8] sm:$0xff]
        %v476 = vld [vmem:[%s322 + $0x1b0] sm:$0xff]
        %v477 = vld [vmem:[%s322 + $0x1b8] sm:$0xff]
        %v478 = vld [vmem:[%s322 + $0x1c0] sm:$0xff]
        %v479 = vld [vmem:[%s322 + $0x1c8] sm:$0xff]
        %v480 = vld [vmem:[%s322 + $0x1d0] sm:$0xff]
        %v481 = vld [vmem:[%s322 + $0x1d8] sm:$0xff]
        %v482 = vld [vmem:[%s322 + $0x1e0] sm:$0xff]
        %v483 = vld [vmem:[%s322 + $0x1e8] sm:$0xff]
        %v484 = vld [vmem:[%s322 + $0x1f0] sm:$0xff]
        %v485 = vld [vmem:[%s322 + $0x1f8] sm:$0xff]
        %v486 = vld [vmem:[%s322 + $0x200] sm:$0xff]
        %v487 = vld [vmem:[%s322 + $0x208] sm:$0xff]
        %v488 = vld [vmem:[%s322 + $0x210] sm:$0xff]
        %v489 = vld [vmem:[%s322 + $0x218] sm:$0xff]
        %v490 = vld [vmem:[%s322 + $0x220] sm:$0xff]
        %v491 = vld [vmem:[%s322 + $0x228] sm:$0xff]
        %v492 = vld [vmem:[%s322 + $0x230] sm:$0xff]
        %v493 = vld [vmem:[%s322 + $0x238] sm:$0xff]
        %v494 = vld [vmem:[%s322 + $0x240] sm:$0xff]
        %v495 = vld [vmem:[%s322 + $0x248] sm:$0xff]
        %v496 = vld [vmem:[%s322 + $0x250] sm:$0xff]
        %v497 = vld [vmem:[%s322 + $0x258] sm:$0xff]
        %v498 = vld [vmem:[%s322 + $0x260] sm:$0xff]
        %v499 = vld [vmem:[%s322 + $0x268] sm:$0xff]
        %v500 = vld [vmem:[%s322 + $0x270] sm:$0xff]
        %v501 = vld [vmem:[%s322 + $0x278] sm:$0xff]
        %v502 = vld [vmem:[%s322 + $0x280] sm:$0xff]
        %v503 = vld [vmem:[%s322 + $0x288] sm:$0xff]
        %v504 = vld [vmem:[%s322 + $0x290] sm:$0xff]
        %v505 = vld [vmem:[%s322 + $0x298] sm:$0xff]
        %v506 = vld [vmem:[%s322 + $0x2a0] sm:$0xff]
        %v507 = vld [vmem:[%s322 + $0x2a8] sm:$0xff]
        %v508 = vld [vmem:[%s322 + $0x2b0] sm:$0xff]
        %v509 = vld [vmem:[%s322 + $0x2b8] sm:$0xff]
        %v510 = vld [vmem:[%s322 + $0x2c0] sm:$0xff]
        %v511 = vld [vmem:[%s322 + $0x2c8] sm:$0xff]
        %v512 = vld [vmem:[%s322 + $0x2d0] sm:$0xff]
        %v513 = vld [vmem:[%s322 + $0x2d8] sm:$0xff]
        %v514 = vld [vmem:[%s322 + $0x2e0] sm:$0xff]
        %v515 = vld [vmem:[%s322 + $0x2e8] sm:$0xff]
        %v516 = vld [vmem:[%s322 + $0x2f0] sm:$0xff]
        %v517 = vld [vmem:[%s322 + $0x2f8] sm:$0xff]
        %v518 = vld [vmem:[%s322 + $0x300] sm:$0xff]
        %v519 = vld [vmem:[%s322 + $0x308] sm:$0xff]
        %v520 = vld [vmem:[%s322 + $0x310] sm:$0xff]
        %v521 = vld [vmem:[%s322 + $0x318] sm:$0xff]
        %v522 = vld [vmem:[%s322 + $0x320] sm:$0xff]
        %v523 = vld [vmem:[%s322 + $0x328] sm:$0xff]
        %v524 = vld [vmem:[%s322 + $0x330] sm:$0xff]
        %v525 = vld [vmem:[%s322 + $0x338] sm:$0xff]
        %v526 = vld [vmem:[%s322 + $0x340] sm:$0xff]
        %v527 = vld [vmem:[%s322 + $0x348] sm:$0xff]
        %v528 = vld [vmem:[%s322 + $0x350] sm:$0xff]
        %v529 = vld [vmem:[%s322 + $0x358] sm:$0xff]
        %v530 = vld [vmem:[%s322 + $0x360] sm:$0xff]
        %v531 = vld [vmem:[%s322 + $0x368] sm:$0xff]
        %v532 = vld [vmem:[%s322 + $0x370] sm:$0xff]
        %v533 = vld [vmem:[%s322 + $0x378] sm:$0xff]
        %v534 = vld [vmem:[%s322 + $0x380] sm:$0xff]
        %v535 = vld [vmem:[%s322 + $0x388] sm:$0xff]
        %v536 = vld [vmem:[%s322 + $0x390] sm:$0xff]
        %v537 = vld [vmem:[%s322 + $0x398] sm:$0xff]
        %v538 = vld [vmem:[%s322 + $0x3a0] sm:$0xff]
        %v539 = vld [vmem:[%s322 + $0x3a8] sm:$0xff]
        %v540 = vld [vmem:[%s322 + $0x3b0] sm:$0xff]
        %v541 = vld [vmem:[%s322 + $0x3b8] sm:$0xff]
        %v542 = vld [vmem:[%s322 + $0x3c0] sm:$0xff]
        %v543 = vld [vmem:[%s322 + $0x3c8] sm:$0xff]
        %v544 = vld [vmem:[%s322 + $0x3d0] sm:$0xff]
        %v545 = vld [vmem:[%s322 + $0x3d8] sm:$0xff]
        %v546 = vld [vmem:[%s322 + $0x3e0] sm:$0xff]
        %v547 = vld [vmem:[%s322 + $0x3e8] sm:$0xff]
        %v548 = vld [vmem:[%s322 + $0x3f0] sm:$0xff]
        %v549 = vld [vmem:[%s322 + $0x3f8] sm:$0xff]
        %v550 = vld [vmem:[%s322 + $0x400] sm:$0xff]
        %v551 = vld [vmem:[%s322 + $0x408] sm:$0xff]
        %v552 = vld [vmem:[%s322 + $0x410] sm:$0xff]
        %v553 = vld [vmem:[%s322 + $0x418] sm:$0xff]
        %v554 = vld [vmem:[%s322 + $0x420] sm:$0xff]
        %v555 = vld [vmem:[%s322 + $0x428] sm:$0xff]
        %v556 = vld [vmem:[%s322 + $0x430] sm:$0xff]
        %v557 = vld [vmem:[%s322 + $0x438] sm:$0xff]
        %v558 = vld [vmem:[%s322 + $0x440] sm:$0xff]
        %v559 = vld [vmem:[%s322 + $0x448] sm:$0xff]
        %v560 = vld [vmem:[%s322 + $0x450] sm:$0xff]
        %v561 = vld [vmem:[%s322 + $0x458] sm:$0xff]
        %v562 = vld [vmem:[%s322 + $0x460] sm:$0xff]
        %v563 = vld [vmem:[%s322 + $0x468] sm:$0xff]
        %v564 = vld [vmem:[%s322 + $0x470] sm:$0xff]
        %v565 = vld [vmem:[%s322 + $0x478] sm:$0xff]
        %v566 = vld [vmem:[%s322 + $0x480] sm:$0xff]
        %v567 = vld [vmem:[%s322 + $0x488] sm:$0xff]
        %v568 = vld [vmem:[%s322 + $0x490] sm:$0xff]
        %v569 = vld [vmem:[%s322 + $0x498] sm:$0xff]
        %v570 = vld [vmem:[%s322 + $0x4a0] sm:$0xff]
        %v571 = vld [vmem:[%s322 + $0x4a8] sm:$0xff]
        %v572 = vld [vmem:[%s322 + $0x4b0] sm:$0xff]
        %v573 = vld [vmem:[%s322 + $0x4b8] sm:$0xff]
        %v574 = vld [vmem:[%s322 + $0x4c0] sm:$0xff]
        %v575 = vld [vmem:[%s322 + $0x4c8] sm:$0xff]
        %v576 = vld [vmem:[%s322 + $0x4d0] sm:$0xff]
        %v577 = vld [vmem:[%s322 + $0x4d8] sm:$0xff]
        %v578 = vld [vmem:[%s322 + $0x4e0] sm:$0xff]
        %v579 = vld [vmem:[%s322 + $0x4e8] sm:$0xff]
        %v580 = vld [vmem:[%s322 + $0x4f0] sm:$0xff]
        %v581 = vld [vmem:[%s322 + $0x4f8] sm:$0xff]
        %v582 = vld [vmem:[%s322 + $0x500] sm:$0xff]
        %v583 = vld [vmem:[%s322 + $0x508] sm:$0xff]
        %v584 = vld [vmem:[%s322 + $0x510] sm:$0xff]
        %v585 = vld [vmem:[%s322 + $0x518] sm:$0xff]
        %v586 = vld [vmem:[%s322 + $0x520] sm:$0xff]
        %v587 = vld [vmem:[%s322 + $0x528] sm:$0xff]
        %v588 = vld [vmem:[%s322 + $0x530] sm:$0xff]
        %v589 = vld [vmem:[%s322 + $0x538] sm:$0xff]
        %v590 = vld [vmem:[%s322 + $0x540] sm:$0xff]
        %v591 = vld [vmem:[%s322 + $0x548] sm:$0xff]
        %v592 = vld [vmem:[%s322 + $0x550] sm:$0xff]
        %v593 = vld [vmem:[%s322 + $0x558] sm:$0xff]
        %v594 = vld [vmem:[%s322 + $0x560] sm:$0xff]
        %v595 = vld [vmem:[%s322 + $0x568] sm:$0xff]
        %v596 = vld [vmem:[%s322 + $0x570] sm:$0xff]
        %v597 = vld [vmem:[%s322 + $0x578] sm:$0xff]
        %v598 = vld [vmem:[%s322 + $0x580] sm:$0xff]
        %v599 = vld [vmem:[%s322 + $0x588] sm:$0xff]
        %v600 = vld [vmem:[%s322 + $0x590] sm:$0xff]
        %v601 = vld [vmem:[%s322 + $0x598] sm:$0xff]
        %v602 = vld [vmem:[%s322 + $0x5a0] sm:$0xff]
        %v603 = vld [vmem:[%s322 + $0x5a8] sm:$0xff]
        %v604 = vld [vmem:[%s322 + $0x5b0] sm:$0xff]
        %v605 = vld [vmem:[%s322 + $0x5b8] sm:$0xff]
        %v606 = vld [vmem:[%s322 + $0x5c0] sm:$0xff]
        %v607 = vld [vmem:[%s322 + $0x5c8] sm:$0xff]
        %v608 = vld [vmem:[%s322 + $0x5d0] sm:$0xff]
        %v609 = vld [vmem:[%s322 + $0x5d8] sm:$0xff]
        %v610 = vld [vmem:[%s322 + $0x5e0] sm:$0xff]
        %v611 = vld [vmem:[%s322 + $0x5e8] sm:$0xff]
        %v612 = vld [vmem:[%s322 + $0x5f0] sm:$0xff]
        %v613 = vld [vmem:[%s322 + $0x5f8] sm:$0xff]
        %v614 = vld [vmem:[%s322 + $0x600] sm:$0xff]
        %v615 = vld [vmem:[%s322 + $0x608] sm:$0xff]
        %v616 = vld [vmem:[%s322 + $0x610] sm:$0xff]
        %v617 = vld [vmem:[%s322 + $0x618] sm:$0xff]
        %v618 = vld [vmem:[%s322 + $0x620] sm:$0xff]
        %v619 = vld [vmem:[%s322 + $0x628] sm:$0xff]
        %v620 = vld [vmem:[%s322 + $0x630] sm:$0xff]
        %v621 = vld [vmem:[%s322 + $0x638] sm:$0xff]
        %v622 = vld [vmem:[%s322 + $0x640] sm:$0xff]
        %v623 = vld [vmem:[%s322 + $0x648] sm:$0xff]
        %v624 = vld [vmem:[%s322 + $0x650] sm:$0xff]
        %v625 = vld [vmem:[%s322 + $0x658] sm:$0xff]
        %v626 = vld [vmem:[%s322 + $0x660] sm:$0xff]
        %v627 = vld [vmem:[%s322 + $0x668] sm:$0xff]
        %v628 = vld [vmem:[%s322 + $0x670] sm:$0xff]
        %v629 = vld [vmem:[%s322 + $0x678] sm:$0xff]
        %v630 = vld [vmem:[%s322 + $0x680] sm:$0xff]
        %v631 = vld [vmem:[%s322 + $0x688] sm:$0xff]
        %v632 = vld [vmem:[%s322 + $0x690] sm:$0xff]
        %v633 = vld [vmem:[%s322 + $0x698] sm:$0xff]
        %v634 = vld [vmem:[%s322 + $0x6a0] sm:$0xff]
        %v635 = vld [vmem:[%s322 + $0x6a8] sm:$0xff]
        %v636 = vld [vmem:[%s322 + $0x6b0] sm:$0xff]
        %v637 = vld [vmem:[%s322 + $0x6b8] sm:$0xff]
        %v638 = vld [vmem:[%s322 + $0x6c0] sm:$0xff]
        %v639 = vld [vmem:[%s322 + $0x6c8] sm:$0xff]
        %v640 = vld [vmem:[%s322 + $0x6d0] sm:$0xff]
        %v641 = vld [vmem:[%s322 + $0x6d8] sm:$0xff]
        %v642 = vld [vmem:[%s322 + $0x6e0] sm:$0xff]
        %v643 = vld [vmem:[%s322 + $0x6e8] sm:$0xff]
        %v644 = vld [vmem:[%s322 + $0x6f0] sm:$0xff]
        %v645 = vld [vmem:[%s322 + $0x6f8] sm:$0xff]
        %v646 = vld [vmem:[%s322 + $0x700] sm:$0xff]
        %v647 = vld [vmem:[%s322 + $0x708] sm:$0xff]
        %v648 = vld [vmem:[%s322 + $0x710] sm:$0xff]
        %v649 = vld [vmem:[%s322 + $0x718] sm:$0xff]
        %v650 = vld [vmem:[%s322 + $0x720] sm:$0xff]
        %v651 = vld [vmem:[%s322 + $0x728] sm:$0xff]
        %v652 = vld [vmem:[%s322 + $0x730] sm:$0xff]
        %v653 = vld [vmem:[%s322 + $0x738] sm:$0xff]
        %v654 = vld [vmem:[%s322 + $0x740] sm:$0xff]
        %v655 = vld [vmem:[%s322 + $0x748] sm:$0xff]
        %v656 = vld [vmem:[%s322 + $0x750] sm:$0xff]
        %v657 = vld [vmem:[%s322 + $0x758] sm:$0xff]
        %v658 = vld [vmem:[%s322 + $0x760] sm:$0xff]
        %v659 = vld [vmem:[%s322 + $0x768] sm:$0xff]
        %v660 = vld [vmem:[%s322 + $0x770] sm:$0xff]
        %v661 = vld [vmem:[%s322 + $0x778] sm:$0xff]
        %v662 = vld [vmem:[%s322 + $0x780] sm:$0xff]
        %v663 = vld [vmem:[%s322 + $0x788] sm:$0xff]
        %v664 = vld [vmem:[%s322 + $0x790] sm:$0xff]
        %v665 = vld [vmem:[%s322 + $0x798] sm:$0xff]
        %v666 = vld [vmem:[%s322 + $0x7a0] sm:$0xff]
        %v667 = vld [vmem:[%s322 + $0x7a8] sm:$0xff]
        %v668 = vld [vmem:[%s322 + $0x7b0] sm:$0xff]
        %v669 = vld [vmem:[%s322 + $0x7b8] sm:$0xff]
        %v670 = vld [vmem:[%s322 + $0x7c0] sm:$0xff]
        %v671 = vld [vmem:[%s322 + $0x7c8] sm:$0xff]
        %v672 = vld [vmem:[%s322 + $0x7d0] sm:$0xff]
        %v673 = vld [vmem:[%s322 + $0x7d8] sm:$0xff]
        %v674 = vld [vmem:[%s322 + $0x7e0] sm:$0xff]
        %v675 = vld [vmem:[%s322 + $0x7e8] sm:$0xff]
        %v676 = vld [vmem:[%s322 + $0x7f0] sm:$0xff]
        %v677 = vld [vmem:[%s322 + $0x7f8] sm:$0xff]
        %v678 = vld [vmem:[%s342] sm:$0xf]
        %v679 = vld [vmem:[%s342 + $0x4] sm:$0xf]
        %v680 = vld [vmem:[%s342 + $0x8] sm:$0xf]
        %v681 = vld [vmem:[%s342 + $0xc] sm:$0xf]
        %v682 = vld [vmem:[%s342 + $0x10] sm:$0xf]
        %v683 = vld [vmem:[%s342 + $0x14] sm:$0xf]
        %v684 = vld [vmem:[%s342 + $0x18] sm:$0xf]
        %v685 = vld [vmem:[%s342 + $0x1c] sm:$0xf]
        %v686 = vld [vmem:[%s342 + $0x20] sm:$0xf]
        %v687 = vld [vmem:[%s342 + $0x24] sm:$0xf]
        %v688 = vld [vmem:[%s342 + $0x28] sm:$0xf]
        %v689 = vld [vmem:[%s342 + $0x2c] sm:$0xf]
        %v690 = vld [vmem:[%s342 + $0x30] sm:$0xf]
        %v691 = vld [vmem:[%s342 + $0x34] sm:$0xf]
        %v692 = vld [vmem:[%s342 + $0x38] sm:$0xf]
        %v693 = vld [vmem:[%s342 + $0x3c] sm:$0xf]
        %v694 = vld [vmem:[%s342 + $0x40] sm:$0xf]
        %v695 = vld [vmem:[%s342 + $0x44] sm:$0xf]
        %v696 = vld [vmem:[%s342 + $0x48] sm:$0xf]
        %v697 = vld [vmem:[%s342 + $0x4c] sm:$0xf]
        %v698 = vld [vmem:[%s342 + $0x50] sm:$0xf]
        %v699 = vld [vmem:[%s342 + $0x54] sm:$0xf]
        %v700 = vld [vmem:[%s342 + $0x58] sm:$0xf]
        %v701 = vld [vmem:[%s342 + $0x5c] sm:$0xf]
        %v702 = vld [vmem:[%s342 + $0x60] sm:$0xf]
        %v703 = vld [vmem:[%s342 + $0x64] sm:$0xf]
        %v704 = vld [vmem:[%s342 + $0x68] sm:$0xf]
        %v705 = vld [vmem:[%s342 + $0x6c] sm:$0xf]
        %v706 = vld [vmem:[%s342 + $0x70] sm:$0xf]
        %v707 = vld [vmem:[%s342 + $0x74] sm:$0xf]
        %v708 = vld [vmem:[%s342 + $0x78] sm:$0xf]
        %v709 = vld [vmem:[%s342 + $0x7c] sm:$0xf]
        %v710 = vld [vmem:[%s342 + $0x80] sm:$0xf]
        %v711 = vld [vmem:[%s342 + $0x84] sm:$0xf]
        %v712 = vld [vmem:[%s342 + $0x88] sm:$0xf]
        %v713 = vld [vmem:[%s342 + $0x8c] sm:$0xf]
        %v714 = vld [vmem:[%s342 + $0x90] sm:$0xf]
        %v715 = vld [vmem:[%s342 + $0x94] sm:$0xf]
        %v716 = vld [vmem:[%s342 + $0x98] sm:$0xf]
        %v717 = vld [vmem:[%s342 + $0x9c] sm:$0xf]
        %v718 = vld [vmem:[%s342 + $0xa0] sm:$0xf]
        %v719 = vld [vmem:[%s342 + $0xa4] sm:$0xf]
        %v720 = vld [vmem:[%s342 + $0xa8] sm:$0xf]
        %v721 = vld [vmem:[%s342 + $0xac] sm:$0xf]
        %v722 = vld [vmem:[%s342 + $0xb0] sm:$0xf]
        %v723 = vld [vmem:[%s342 + $0xb4] sm:$0xf]
        %v724 = vld [vmem:[%s342 + $0xb8] sm:$0xf]
        %v725 = vld [vmem:[%s342 + $0xbc] sm:$0xf]
        %v726 = vld [vmem:[%s342 + $0xc0] sm:$0xf]
        %v727 = vld [vmem:[%s342 + $0xc4] sm:$0xf]
        %v728 = vld [vmem:[%s342 + $0xc8] sm:$0xf]
        %v729 = vld [vmem:[%s342 + $0xcc] sm:$0xf]
        %v730 = vld [vmem:[%s342 + $0xd0] sm:$0xf]
        %v731 = vld [vmem:[%s342 + $0xd4] sm:$0xf]
        %v732 = vld [vmem:[%s342 + $0xd8] sm:$0xf]
        %v733 = vld [vmem:[%s342 + $0xdc] sm:$0xf]
        %v734 = vld [vmem:[%s342 + $0xe0] sm:$0xf]
        %v735 = vld [vmem:[%s342 + $0xe4] sm:$0xf]
        %v736 = vld [vmem:[%s342 + $0xe8] sm:$0xf]
        %v737 = vld [vmem:[%s342 + $0xec] sm:$0xf]
        %v738 = vld [vmem:[%s342 + $0xf0] sm:$0xf]
        %v739 = vld [vmem:[%s342 + $0xf4] sm:$0xf]
        %v740 = vld [vmem:[%s342 + $0xf8] sm:$0xf]
        %v741 = vld [vmem:[%s342 + $0xfc] sm:$0xf]
        %v742 = vld [vmem:[%s332] sm:$0xf]
        %v744 = vperm.slane %v742, 0
        %v745 = vperm.slane %v742, 1
        %v746 = vperm.slane %v742, 2
        %v747 = vperm.slane %v742, 3
        %v756 = vunpack.c.l.b16 %v418
        %v757 = vunpack.c.h.b16 %v418
        %v758 = vunpack.c.l.b16 %v419
        %v759 = vunpack.c.h.b16 %v419
        %v760 = vunpack.c.l.b16 %v420
        %v761 = vunpack.c.h.b16 %v420
        %v762 = vunpack.c.l.b16 %v421
        %v763 = vunpack.c.h.b16 %v421
        %v764 = vpack.c.b16 %v756, %v756
        %v765 = vpack.c.b16 %v757, %v757
        %v766 = vpack.c.b16 %v758, %v758
        %v767 = vpack.c.b16 %v759, %v759
        %v768 = vpack.c.b16 %v760, %v760
        %v769 = vpack.c.b16 %v761, %v761
        %v770 = vpack.c.b16 %v762, %v762
        %v771 = vpack.c.b16 %v763, %v763
        %v1036 = vunpack.c.l.b16 %v422
        %v1037 = vunpack.c.h.b16 %v422
        %v1038 = vunpack.c.l.b16 %v423
        %v1039 = vunpack.c.h.b16 %v423
        %v1040 = vunpack.c.l.b16 %v424
        %v1041 = vunpack.c.h.b16 %v424
        %v1042 = vunpack.c.l.b16 %v425
        %v1043 = vunpack.c.h.b16 %v425
        %v1044 = vunpack.c.l.b16 %v426
        %v1045 = vunpack.c.h.b16 %v426
        %v1046 = vunpack.c.l.b16 %v427
        %v1047 = vunpack.c.h.b16 %v427
        %v1048 = vunpack.c.l.b16 %v428
        %v1049 = vunpack.c.h.b16 %v428
        %v1050 = vunpack.c.l.b16 %v429
        %v1051 = vunpack.c.h.b16 %v429
        %v1052 = vunpack.c.l.b16 %v430
        %v1053 = vunpack.c.h.b16 %v430
        %v1054 = vunpack.c.l.b16 %v431
        %v1055 = vunpack.c.h.b16 %v431
        %v1056 = vunpack.c.l.b16 %v432
        %v1057 = vunpack.c.h.b16 %v432
        %v1058 = vunpack.c.l.b16 %v433
        %v1059 = vunpack.c.h.b16 %v433
        %v1060 = vunpack.c.l.b16 %v434
        %v1061 = vunpack.c.h.b16 %v434
        %v1062 = vunpack.c.l.b16 %v435
        %v1063 = vunpack.c.h.b16 %v435
        %v1064 = vunpack.c.l.b16 %v436
        %v1065 = vunpack.c.h.b16 %v436
        %v1066 = vunpack.c.l.b16 %v437
        %v1067 = vunpack.c.h.b16 %v437
        %v1068 = vunpack.c.l.b16 %v438
        %v1069 = vunpack.c.h.b16 %v438
        %v1070 = vunpack.c.l.b16 %v439
        %v1071 = vunpack.c.h.b16 %v439
        %v1072 = vunpack.c.l.b16 %v440
        %v1073 = vunpack.c.h.b16 %v440
        %v1074 = vunpack.c.l.b16 %v441
        %v1075 = vunpack.c.h.b16 %v441
        %v1076 = vunpack.c.l.b16 %v442
        %v1077 = vunpack.c.h.b16 %v442
        %v1078 = vunpack.c.l.b16 %v443
        %v1079 = vunpack.c.h.b16 %v443
        %v1080 = vunpack.c.l.b16 %v444
        %v1081 = vunpack.c.h.b16 %v444
        %v1082 = vunpack.c.l.b16 %v445
        %v1083 = vunpack.c.h.b16 %v445
        %v1084 = vunpack.c.l.b16 %v446
        %v1085 = vunpack.c.h.b16 %v446
        %v1086 = vunpack.c.l.b16 %v447
        %v1087 = vunpack.c.h.b16 %v447
        %v1088 = vunpack.c.l.b16 %v448
        %v1089 = vunpack.c.h.b16 %v448
        %v1090 = vunpack.c.l.b16 %v449
        %v1091 = vunpack.c.h.b16 %v449
        %v1092 = vunpack.c.l.b16 %v450
        %v1093 = vunpack.c.h.b16 %v450
        %v1094 = vunpack.c.l.b16 %v451
        %v1095 = vunpack.c.h.b16 %v451
        %v1096 = vunpack.c.l.b16 %v452
        %v1097 = vunpack.c.h.b16 %v452
        %v1098 = vunpack.c.l.b16 %v453
        %v1099 = vunpack.c.h.b16 %v453
        %v1100 = vunpack.c.l.b16 %v454
        %v1101 = vunpack.c.h.b16 %v454
        %v1102 = vunpack.c.l.b16 %v455
        %v1103 = vunpack.c.h.b16 %v455
        %v1104 = vunpack.c.l.b16 %v456
        %v1105 = vunpack.c.h.b16 %v456
        %v1106 = vunpack.c.l.b16 %v457
        %v1107 = vunpack.c.h.b16 %v457
        %v1108 = vunpack.c.l.b16 %v458
        %v1109 = vunpack.c.h.b16 %v458
        %v1110 = vunpack.c.l.b16 %v459
        %v1111 = vunpack.c.h.b16 %v459
        %v1112 = vunpack.c.l.b16 %v460
        %v1113 = vunpack.c.h.b16 %v460
        %v1114 = vunpack.c.l.b16 %v461
        %v1115 = vunpack.c.h.b16 %v461
        %v1116 = vunpack.c.l.b16 %v462
        %v1117 = vunpack.c.h.b16 %v462
        %v1118 = vunpack.c.l.b16 %v463
        %v1119 = vunpack.c.h.b16 %v463
        %v1120 = vunpack.c.l.b16 %v464
        %v1121 = vunpack.c.h.b16 %v464
        %v1122 = vunpack.c.l.b16 %v465
        %v1123 = vunpack.c.h.b16 %v465
        %v1124 = vunpack.c.l.b16 %v466
        %v1125 = vunpack.c.h.b16 %v466
        %v1126 = vunpack.c.l.b16 %v467
        %v1127 = vunpack.c.h.b16 %v467
        %v1128 = vunpack.c.l.b16 %v468
        %v1129 = vunpack.c.h.b16 %v468
        %v1130 = vunpack.c.l.b16 %v469
        %v1131 = vunpack.c.h.b16 %v469
        %v1132 = vunpack.c.l.b16 %v470
        %v1133 = vunpack.c.h.b16 %v470
        %v1134 = vunpack.c.l.b16 %v471
        %v1135 = vunpack.c.h.b16 %v471
        %v1136 = vunpack.c.l.b16 %v472
        %v1137 = vunpack.c.h.b16 %v472
        %v1138 = vunpack.c.l.b16 %v473
        %v1139 = vunpack.c.h.b16 %v473
        %v1140 = vunpack.c.l.b16 %v474
        %v1141 = vunpack.c.h.b16 %v474
        %v1142 = vunpack.c.l.b16 %v475
        %v1143 = vunpack.c.h.b16 %v475
        %v1144 = vunpack.c.l.b16 %v476
        %v1145 = vunpack.c.h.b16 %v476
        %v1146 = vunpack.c.l.b16 %v477
        %v1147 = vunpack.c.h.b16 %v477
        %v1148 = vunpack.c.l.b16 %v478
        %v1149 = vunpack.c.h.b16 %v478
        %v1150 = vunpack.c.l.b16 %v479
        %v1151 = vunpack.c.h.b16 %v479
        %v1152 = vunpack.c.l.b16 %v480
        %v1153 = vunpack.c.h.b16 %v480
        %v1154 = vunpack.c.l.b16 %v481
        %v1155 = vunpack.c.h.b16 %v481
        %v1156 = vunpack.c.l.b16 %v482
        %v1157 = vunpack.c.h.b16 %v482
        %v1158 = vunpack.c.l.b16 %v483
        %v1159 = vunpack.c.h.b16 %v483
        %v1160 = vunpack.c.l.b16 %v484
        %v1161 = vunpack.c.h.b16 %v484
        %v1162 = vunpack.c.l.b16 %v485
        %v1163 = vunpack.c.h.b16 %v485
        %v1164 = vunpack.c.l.b16 %v486
        %v1165 = vunpack.c.h.b16 %v486
        %v1166 = vunpack.c.l.b16 %v487
        %v1167 = vunpack.c.h.b16 %v487
        %v1168 = vunpack.c.l.b16 %v488
        %v1169 = vunpack.c.h.b16 %v488
        %v1170 = vunpack.c.l.b16 %v489
        %v1171 = vunpack.c.h.b16 %v489
        %v1172 = vunpack.c.l.b16 %v490
        %v1173 = vunpack.c.h.b16 %v490
        %v1174 = vunpack.c.l.b16 %v491
        %v1175 = vunpack.c.h.b16 %v491
        %v1176 = vunpack.c.l.b16 %v492
        %v1177 = vunpack.c.h.b16 %v492
        %v1178 = vunpack.c.l.b16 %v493
        %v1179 = vunpack.c.h.b16 %v493
        %v1180 = vunpack.c.l.b16 %v494
        %v1181 = vunpack.c.h.b16 %v494
        %v1182 = vunpack.c.l.b16 %v495
        %v1183 = vunpack.c.h.b16 %v495
        %v1184 = vunpack.c.l.b16 %v496
        %v1185 = vunpack.c.h.b16 %v496
        %v1186 = vunpack.c.l.b16 %v497
        %v1187 = vunpack.c.h.b16 %v497
        %v1188 = vunpack.c.l.b16 %v498
        %v1189 = vunpack.c.h.b16 %v498
        %v1190 = vunpack.c.l.b16 %v499
        %v1191 = vunpack.c.h.b16 %v499
        %v1192 = vunpack.c.l.b16 %v500
        %v1193 = vunpack.c.h.b16 %v500
        %v1194 = vunpack.c.l.b16 %v501
        %v1195 = vunpack.c.h.b16 %v501
        %v1196 = vunpack.c.l.b16 %v502
        %v1197 = vunpack.c.h.b16 %v502
        %v1198 = vunpack.c.l.b16 %v503
        %v1199 = vunpack.c.h.b16 %v503
        %v1200 = vunpack.c.l.b16 %v504
        %v1201 = vunpack.c.h.b16 %v504
        %v1202 = vunpack.c.l.b16 %v505
        %v1203 = vunpack.c.h.b16 %v505
        %v1204 = vunpack.c.l.b16 %v506
        %v1205 = vunpack.c.h.b16 %v506
        %v1206 = vunpack.c.l.b16 %v507
        %v1207 = vunpack.c.h.b16 %v507
        %v1208 = vunpack.c.l.b16 %v508
        %v1209 = vunpack.c.h.b16 %v508
        %v1210 = vunpack.c.l.b16 %v509
        %v1211 = vunpack.c.h.b16 %v509
        %v1212 = vunpack.c.l.b16 %v510
        %v1213 = vunpack.c.h.b16 %v510
        %v1214 = vunpack.c.l.b16 %v511
        %v1215 = vunpack.c.h.b16 %v511
        %v1216 = vunpack.c.l.b16 %v512
        %v1217 = vunpack.c.h.b16 %v512
        %v1218 = vunpack.c.l.b16 %v513
        %v1219 = vunpack.c.h.b16 %v513
        %v1220 = vunpack.c.l.b16 %v514
        %v1221 = vunpack.c.h.b16 %v514
        %v1222 = vunpack.c.l.b16 %v515
        %v1223 = vunpack.c.h.b16 %v515
        %v1224 = vunpack.c.l.b16 %v516
        %v1225 = vunpack.c.h.b16 %v516
        %v1226 = vunpack.c.l.b16 %v517
        %v1227 = vunpack.c.h.b16 %v517
        %v1228 = vunpack.c.l.b16 %v518
        %v1229 = vunpack.c.h.b16 %v518
        %v1230 = vunpack.c.l.b16 %v519
        %v1231 = vunpack.c.h.b16 %v519
        %v1232 = vunpack.c.l.b16 %v520
        %v1233 = vunpack.c.h.b16 %v520
        %v1234 = vunpack.c.l.b16 %v521
        %v1235 = vunpack.c.h.b16 %v521
        %v1236 = vunpack.c.l.b16 %v522
        %v1237 = vunpack.c.h.b16 %v522
        %v1238 = vunpack.c.l.b16 %v523
        %v1239 = vunpack.c.h.b16 %v523
        %v1240 = vunpack.c.l.b16 %v524
        %v1241 = vunpack.c.h.b16 %v524
        %v1242 = vunpack.c.l.b16 %v525
        %v1243 = vunpack.c.h.b16 %v525
        %v1244 = vunpack.c.l.b16 %v526
        %v1245 = vunpack.c.h.b16 %v526
        %v1246 = vunpack.c.l.b16 %v527
        %v1247 = vunpack.c.h.b16 %v527
        %v1248 = vunpack.c.l.b16 %v528
        %v1249 = vunpack.c.h.b16 %v528
        %v1250 = vunpack.c.l.b16 %v529
        %v1251 = vunpack.c.h.b16 %v529
        %v1252 = vunpack.c.l.b16 %v530
        %v1253 = vunpack.c.h.b16 %v530
        %v1254 = vunpack.c.l.b16 %v531
        %v1255 = vunpack.c.h.b16 %v531
        %v1256 = vunpack.c.l.b16 %v532
        %v1257 = vunpack.c.h.b16 %v532
        %v1258 = vunpack.c.l.b16 %v533
        %v1259 = vunpack.c.h.b16 %v533
        %v1260 = vunpack.c.l.b16 %v534
        %v1261 = vunpack.c.h.b16 %v534
        %v1262 = vunpack.c.l.b16 %v535
        %v1263 = vunpack.c.h.b16 %v535
        %v1264 = vunpack.c.l.b16 %v536
        %v1265 = vunpack.c.h.b16 %v536
        %v1266 = vunpack.c.l.b16 %v537
        %v1267 = vunpack.c.h.b16 %v537
        %v1268 = vunpack.c.l.b16 %v538
        %v1269 = vunpack.c.h.b16 %v538
        %v1270 = vunpack.c.l.b16 %v539
        %v1271 = vunpack.c.h.b16 %v539
        %v1272 = vunpack.c.l.b16 %v540
        %v1273 = vunpack.c.h.b16 %v540
        %v1274 = vunpack.c.l.b16 %v541
        %v1275 = vunpack.c.h.b16 %v541
        %v1276 = vunpack.c.l.b16 %v542
        %v1277 = vunpack.c.h.b16 %v542
        %v1278 = vunpack.c.l.b16 %v543
        %v1279 = vunpack.c.h.b16 %v543
        %v1280 = vunpack.c.l.b16 %v544
        %v1281 = vunpack.c.h.b16 %v544
        %v1282 = vunpack.c.l.b16 %v545
        %v1283 = vunpack.c.h.b16 %v545
        %v1284 = vunpack.c.l.b16 %v546
        %v1285 = vunpack.c.h.b16 %v546
        %v1286 = vunpack.c.l.b16 %v547
        %v1287 = vunpack.c.h.b16 %v547
        %v1288 = vunpack.c.l.b16 %v548
        %v1289 = vunpack.c.h.b16 %v548
        %v1290 = vunpack.c.l.b16 %v549
        %v1291 = vunpack.c.h.b16 %v549
        %v1292 = vunpack.c.l.b16 %v550
        %v1293 = vunpack.c.h.b16 %v550
        %v1294 = vunpack.c.l.b16 %v551
        %v1295 = vunpack.c.h.b16 %v551
        %v1296 = vunpack.c.l.b16 %v552
        %v1297 = vunpack.c.h.b16 %v552
        %v1298 = vunpack.c.l.b16 %v553
        %v1299 = vunpack.c.h.b16 %v553
        %v1300 = vunpack.c.l.b16 %v554
        %v1301 = vunpack.c.h.b16 %v554
        %v1302 = vunpack.c.l.b16 %v555
        %v1303 = vunpack.c.h.b16 %v555
        %v1304 = vunpack.c.l.b16 %v556
        %v1305 = vunpack.c.h.b16 %v556
        %v1306 = vunpack.c.l.b16 %v557
        %v1307 = vunpack.c.h.b16 %v557
        %v1308 = vunpack.c.l.b16 %v558
        %v1309 = vunpack.c.h.b16 %v558
        %v1310 = vunpack.c.l.b16 %v559
        %v1311 = vunpack.c.h.b16 %v559
        %v1312 = vunpack.c.l.b16 %v560
        %v1313 = vunpack.c.h.b16 %v560
        %v1314 = vunpack.c.l.b16 %v561
        %v1315 = vunpack.c.h.b16 %v561
        %v1316 = vunpack.c.l.b16 %v562
        %v1317 = vunpack.c.h.b16 %v562
        %v1318 = vunpack.c.l.b16 %v563
        %v1319 = vunpack.c.h.b16 %v563
        %v1320 = vunpack.c.l.b16 %v564
        %v1321 = vunpack.c.h.b16 %v564
        %v1322 = vunpack.c.l.b16 %v565
        %v1323 = vunpack.c.h.b16 %v565
        %v1324 = vunpack.c.l.b16 %v566
        %v1325 = vunpack.c.h.b16 %v566
        %v1326 = vunpack.c.l.b16 %v567
        %v1327 = vunpack.c.h.b16 %v567
        %v1328 = vunpack.c.l.b16 %v568
        %v1329 = vunpack.c.h.b16 %v568
        %v1330 = vunpack.c.l.b16 %v569
        %v1331 = vunpack.c.h.b16 %v569
        %v1332 = vunpack.c.l.b16 %v570
        %v1333 = vunpack.c.h.b16 %v570
        %v1334 = vunpack.c.l.b16 %v571
        %v1335 = vunpack.c.h.b16 %v571
        %v1336 = vunpack.c.l.b16 %v572
        %v1337 = vunpack.c.h.b16 %v572
        %v1338 = vunpack.c.l.b16 %v573
        %v1339 = vunpack.c.h.b16 %v573
        %v1340 = vunpack.c.l.b16 %v574
        %v1341 = vunpack.c.h.b16 %v574
        %v1342 = vunpack.c.l.b16 %v575
        %v1343 = vunpack.c.h.b16 %v575
        %v1344 = vunpack.c.l.b16 %v576
        %v1345 = vunpack.c.h.b16 %v576
        %v1346 = vunpack.c.l.b16 %v577
        %v1347 = vunpack.c.h.b16 %v577
        %v1348 = vunpack.c.l.b16 %v578
        %v1349 = vunpack.c.h.b16 %v578
        %v1350 = vunpack.c.l.b16 %v579
        %v1351 = vunpack.c.h.b16 %v579
        %v1352 = vunpack.c.l.b16 %v580
        %v1353 = vunpack.c.h.b16 %v580
        %v1354 = vunpack.c.l.b16 %v581
        %v1355 = vunpack.c.h.b16 %v581
        %v1356 = vunpack.c.l.b16 %v582
        %v1357 = vunpack.c.h.b16 %v582
        %v1358 = vunpack.c.l.b16 %v583
        %v1359 = vunpack.c.h.b16 %v583
        %v1360 = vunpack.c.l.b16 %v584
        %v1361 = vunpack.c.h.b16 %v584
        %v1362 = vunpack.c.l.b16 %v585
        %v1363 = vunpack.c.h.b16 %v585
        %v1364 = vunpack.c.l.b16 %v586
        %v1365 = vunpack.c.h.b16 %v586
        %v1366 = vunpack.c.l.b16 %v587
        %v1367 = vunpack.c.h.b16 %v587
        %v1368 = vunpack.c.l.b16 %v588
        %v1369 = vunpack.c.h.b16 %v588
        %v1370 = vunpack.c.l.b16 %v589
        %v1371 = vunpack.c.h.b16 %v589
        %v1372 = vunpack.c.l.b16 %v590
        %v1373 = vunpack.c.h.b16 %v590
        %v1374 = vunpack.c.l.b16 %v591
        %v1375 = vunpack.c.h.b16 %v591
        %v1376 = vunpack.c.l.b16 %v592
        %v1377 = vunpack.c.h.b16 %v592
        %v1378 = vunpack.c.l.b16 %v593
        %v1379 = vunpack.c.h.b16 %v593
        %v1380 = vunpack.c.l.b16 %v594
        %v1381 = vunpack.c.h.b16 %v594
        %v1382 = vunpack.c.l.b16 %v595
        %v1383 = vunpack.c.h.b16 %v595
        %v1384 = vunpack.c.l.b16 %v596
        %v1385 = vunpack.c.h.b16 %v596
        %v1386 = vunpack.c.l.b16 %v597
        %v1387 = vunpack.c.h.b16 %v597
        %v1388 = vunpack.c.l.b16 %v598
        %v1389 = vunpack.c.h.b16 %v598
        %v1390 = vunpack.c.l.b16 %v599
        %v1391 = vunpack.c.h.b16 %v599
        %v1392 = vunpack.c.l.b16 %v600
        %v1393 = vunpack.c.h.b16 %v600
        %v1394 = vunpack.c.l.b16 %v601
        %v1395 = vunpack.c.h.b16 %v601
        %v1396 = vunpack.c.l.b16 %v602
        %v1397 = vunpack.c.h.b16 %v602
        %v1398 = vunpack.c.l.b16 %v603
        %v1399 = vunpack.c.h.b16 %v603
        %v1400 = vunpack.c.l.b16 %v604
        %v1401 = vunpack.c.h.b16 %v604
        %v1402 = vunpack.c.l.b16 %v605
        %v1403 = vunpack.c.h.b16 %v605
        %v1404 = vunpack.c.l.b16 %v606
        %v1405 = vunpack.c.h.b16 %v606
        %v1406 = vunpack.c.l.b16 %v607
        %v1407 = vunpack.c.h.b16 %v607
        %v1408 = vunpack.c.l.b16 %v608
        %v1409 = vunpack.c.h.b16 %v608
        %v1410 = vunpack.c.l.b16 %v609
        %v1411 = vunpack.c.h.b16 %v609
        %v1412 = vunpack.c.l.b16 %v610
        %v1413 = vunpack.c.h.b16 %v610
        %v1414 = vunpack.c.l.b16 %v611
        %v1415 = vunpack.c.h.b16 %v611
        %v1416 = vunpack.c.l.b16 %v612
        %v1417 = vunpack.c.h.b16 %v612
        %v1418 = vunpack.c.l.b16 %v613
        %v1419 = vunpack.c.h.b16 %v613
        %v1420 = vunpack.c.l.b16 %v614
        %v1421 = vunpack.c.h.b16 %v614
        %v1422 = vunpack.c.l.b16 %v615
        %v1423 = vunpack.c.h.b16 %v615
        %v1424 = vunpack.c.l.b16 %v616
        %v1425 = vunpack.c.h.b16 %v616
        %v1426 = vunpack.c.l.b16 %v617
        %v1427 = vunpack.c.h.b16 %v617
        %v1428 = vunpack.c.l.b16 %v618
        %v1429 = vunpack.c.h.b16 %v618
        %v1430 = vunpack.c.l.b16 %v619
        %v1431 = vunpack.c.h.b16 %v619
        %v1432 = vunpack.c.l.b16 %v620
        %v1433 = vunpack.c.h.b16 %v620
        %v1434 = vunpack.c.l.b16 %v621
        %v1435 = vunpack.c.h.b16 %v621
        %v1436 = vunpack.c.l.b16 %v622
        %v1437 = vunpack.c.h.b16 %v622
        %v1438 = vunpack.c.l.b16 %v623
        %v1439 = vunpack.c.h.b16 %v623
        %v1440 = vunpack.c.l.b16 %v624
        %v1441 = vunpack.c.h.b16 %v624
        %v1442 = vunpack.c.l.b16 %v625
        %v1443 = vunpack.c.h.b16 %v625
        %v1444 = vunpack.c.l.b16 %v626
        %v1445 = vunpack.c.h.b16 %v626
        %v1446 = vunpack.c.l.b16 %v627
        %v1447 = vunpack.c.h.b16 %v627
        %v1448 = vunpack.c.l.b16 %v628
        %v1449 = vunpack.c.h.b16 %v628
        %v1450 = vunpack.c.l.b16 %v629
        %v1451 = vunpack.c.h.b16 %v629
        %v1452 = vunpack.c.l.b16 %v630
        %v1453 = vunpack.c.h.b16 %v630
        %v1454 = vunpack.c.l.b16 %v631
        %v1455 = vunpack.c.h.b16 %v631
        %v1456 = vunpack.c.l.b16 %v632
        %v1457 = vunpack.c.h.b16 %v632
        %v1458 = vunpack.c.l.b16 %v633
        %v1459 = vunpack.c.h.b16 %v633
        %v1460 = vunpack.c.l.b16 %v634
        %v1461 = vunpack.c.h.b16 %v634
        %v1462 = vunpack.c.l.b16 %v635
        %v1463 = vunpack.c.h.b16 %v635
        %v1464 = vunpack.c.l.b16 %v636
        %v1465 = vunpack.c.h.b16 %v636
        %v1466 = vunpack.c.l.b16 %v637
        %v1467 = vunpack.c.h.b16 %v637
        %v1468 = vunpack.c.l.b16 %v638
        %v1469 = vunpack.c.h.b16 %v638
        %v1470 = vunpack.c.l.b16 %v639
        %v1471 = vunpack.c.h.b16 %v639
        %v1472 = vunpack.c.l.b16 %v640
        %v1473 = vunpack.c.h.b16 %v640
        %v1474 = vunpack.c.l.b16 %v641
        %v1475 = vunpack.c.h.b16 %v641
        %v1476 = vunpack.c.l.b16 %v642
        %v1477 = vunpack.c.h.b16 %v642
        %v1478 = vunpack.c.l.b16 %v643
        %v1479 = vunpack.c.h.b16 %v643
        %v1480 = vunpack.c.l.b16 %v644
        %v1481 = vunpack.c.h.b16 %v644
        %v1482 = vunpack.c.l.b16 %v645
        %v1483 = vunpack.c.h.b16 %v645
        %v1484 = vunpack.c.l.b16 %v646
        %v1485 = vunpack.c.h.b16 %v646
        %v1486 = vunpack.c.l.b16 %v647
        %v1487 = vunpack.c.h.b16 %v647
        %v1488 = vunpack.c.l.b16 %v648
        %v1489 = vunpack.c.h.b16 %v648
        %v1490 = vunpack.c.l.b16 %v649
        %v1491 = vunpack.c.h.b16 %v649
        %v1492 = vunpack.c.l.b16 %v650
        %v1493 = vunpack.c.h.b16 %v650
        %v1494 = vunpack.c.l.b16 %v651
        %v1495 = vunpack.c.h.b16 %v651
        %v1496 = vunpack.c.l.b16 %v652
        %v1497 = vunpack.c.h.b16 %v652
        %v1498 = vunpack.c.l.b16 %v653
        %v1499 = vunpack.c.h.b16 %v653
        %v1500 = vunpack.c.l.b16 %v654
        %v1501 = vunpack.c.h.b16 %v654
        %v1502 = vunpack.c.l.b16 %v655
        %v1503 = vunpack.c.h.b16 %v655
        %v1504 = vunpack.c.l.b16 %v656
        %v1505 = vunpack.c.h.b16 %v656
        %v1506 = vunpack.c.l.b16 %v657
        %v1507 = vunpack.c.h.b16 %v657
        %v1508 = vunpack.c.l.b16 %v658
        %v1509 = vunpack.c.h.b16 %v658
        %v1510 = vunpack.c.l.b16 %v659
        %v1511 = vunpack.c.h.b16 %v659
        %v1512 = vunpack.c.l.b16 %v660
        %v1513 = vunpack.c.h.b16 %v660
        %v1514 = vunpack.c.l.b16 %v661
        %v1515 = vunpack.c.h.b16 %v661
        %v1516 = vunpack.c.l.b16 %v662
        %v1517 = vunpack.c.h.b16 %v662
        %v1518 = vunpack.c.l.b16 %v663
        %v1519 = vunpack.c.h.b16 %v663
        %v1520 = vunpack.c.l.b16 %v664
        %v1521 = vunpack.c.h.b16 %v664
        %v1522 = vunpack.c.l.b16 %v665
        %v1523 = vunpack.c.h.b16 %v665
        %v1524 = vunpack.c.l.b16 %v666
        %v1525 = vunpack.c.h.b16 %v666
        %v1526 = vunpack.c.l.b16 %v667
        %v1527 = vunpack.c.h.b16 %v667
        %v1528 = vunpack.c.l.b16 %v668
        %v1529 = vunpack.c.h.b16 %v668
        %v1530 = vunpack.c.l.b16 %v669
        %v1531 = vunpack.c.h.b16 %v669
        %v1532 = vunpack.c.l.b16 %v670
        %v1533 = vunpack.c.h.b16 %v670
        %v1534 = vunpack.c.l.b16 %v671
        %v1535 = vunpack.c.h.b16 %v671
        %v1536 = vunpack.c.l.b16 %v672
        %v1537 = vunpack.c.h.b16 %v672
        %v1538 = vunpack.c.l.b16 %v673
        %v1539 = vunpack.c.h.b16 %v673
        %v1540 = vunpack.c.l.b16 %v674
        %v1541 = vunpack.c.h.b16 %v674
        %v1542 = vunpack.c.l.b16 %v675
        %v1543 = vunpack.c.h.b16 %v675
        %v1544 = vunpack.c.l.b16 %v676
        %v1545 = vunpack.c.h.b16 %v676
        %v1546 = vunpack.c.l.b16 %v677
        %v1547 = vunpack.c.h.b16 %v677
        %v1548 = vpack.c.b16 %v1040, %v1036
        %v1549 = vpack.c.b16 %v1041, %v1037
        %v1550 = vpack.c.b16 %v1042, %v1038
        %v1551 = vpack.c.b16 %v1043, %v1039
        %v1552 = vpack.c.b16 %v1048, %v1044
        %v1553 = vpack.c.b16 %v1049, %v1045
        %v1554 = vpack.c.b16 %v1050, %v1046
        %v1555 = vpack.c.b16 %v1051, %v1047
        %v1556 = vpack.c.b16 %v1056, %v1052
        %v1557 = vpack.c.b16 %v1057, %v1053
        %v1558 = vpack.c.b16 %v1058, %v1054
        %v1559 = vpack.c.b16 %v1059, %v1055
        %v1560 = vpack.c.b16 %v1064, %v1060
        %v1561 = vpack.c.b16 %v1065, %v1061
        %v1562 = vpack.c.b16 %v1066, %v1062
        %v1563 = vpack.c.b16 %v1067, %v1063
        %v1564 = vpack.c.b16 %v1072, %v1068
        %v1565 = vpack.c.b16 %v1073, %v1069
        %v1566 = vpack.c.b16 %v1074, %v1070
        %v1567 = vpack.c.b16 %v1075, %v1071
        %v1568 = vpack.c.b16 %v1080, %v1076
        %v1569 = vpack.c.b16 %v1081, %v1077
        %v1570 = vpack.c.b16 %v1082, %v1078
        %v1571 = vpack.c.b16 %v1083, %v1079
        %v1572 = vpack.c.b16 %v1088, %v1084
        %v1573 = vpack.c.b16 %v1089, %v1085
        %v1574 = vpack.c.b16 %v1090, %v1086
        %v1575 = vpack.c.b16 %v1091, %v1087
        %v1576 = vpack.c.b16 %v1096, %v1092
        %v1577 = vpack.c.b16 %v1097, %v1093
        %v1578 = vpack.c.b16 %v1098, %v1094
        %v1579 = vpack.c.b16 %v1099, %v1095
        %v1580 = vpack.c.b16 %v1104, %v1100
        %v1581 = vpack.c.b16 %v1105, %v1101
        %v1582 = vpack.c.b16 %v1106, %v1102
        %v1583 = vpack.c.b16 %v1107, %v1103
        %v1584 = vpack.c.b16 %v1112, %v1108
        %v1585 = vpack.c.b16 %v1113, %v1109
        %v1586 = vpack.c.b16 %v1114, %v1110
        %v1587 = vpack.c.b16 %v1115, %v1111
        %v1588 = vpack.c.b16 %v1120, %v1116
        %v1589 = vpack.c.b16 %v1121, %v1117
        %v1590 = vpack.c.b16 %v1122, %v1118
        %v1591 = vpack.c.b16 %v1123, %v1119
        %v1592 = vpack.c.b16 %v1128, %v1124
        %v1593 = vpack.c.b16 %v1129, %v1125
        %v1594 = vpack.c.b16 %v1130, %v1126
        %v1595 = vpack.c.b16 %v1131, %v1127
        %v1596 = vpack.c.b16 %v1136, %v1132
        %v1597 = vpack.c.b16 %v1137, %v1133
        %v1598 = vpack.c.b16 %v1138, %v1134
        %v1599 = vpack.c.b16 %v1139, %v1135
        %v1600 = vpack.c.b16 %v1144, %v1140
        %v1601 = vpack.c.b16 %v1145, %v1141
        %v1602 = vpack.c.b16 %v1146, %v1142
        %v1603 = vpack.c.b16 %v1147, %v1143
        %v1604 = vpack.c.b16 %v1152, %v1148
        %v1605 = vpack.c.b16 %v1153, %v1149
        %v1606 = vpack.c.b16 %v1154, %v1150
        %v1607 = vpack.c.b16 %v1155, %v1151
        %v1608 = vpack.c.b16 %v1160, %v1156
        %v1609 = vpack.c.b16 %v1161, %v1157
        %v1610 = vpack.c.b16 %v1162, %v1158
        %v1611 = vpack.c.b16 %v1163, %v1159
        %v1612 = vpack.c.b16 %v1168, %v1164
        %v1613 = vpack.c.b16 %v1169, %v1165
        %v1614 = vpack.c.b16 %v1170, %v1166
        %v1615 = vpack.c.b16 %v1171, %v1167
        %v1616 = vpack.c.b16 %v1176, %v1172
        %v1617 = vpack.c.b16 %v1177, %v1173
        %v1618 = vpack.c.b16 %v1178, %v1174
        %v1619 = vpack.c.b16 %v1179, %v1175
        %v1620 = vpack.c.b16 %v1184, %v1180
        %v1621 = vpack.c.b16 %v1185, %v1181
        %v1622 = vpack.c.b16 %v1186, %v1182
        %v1623 = vpack.c.b16 %v1187, %v1183
        %v1624 = vpack.c.b16 %v1192, %v1188
        %v1625 = vpack.c.b16 %v1193, %v1189
        %v1626 = vpack.c.b16 %v1194, %v1190
        %v1627 = vpack.c.b16 %v1195, %v1191
        %v1628 = vpack.c.b16 %v1200, %v1196
        %v1629 = vpack.c.b16 %v1201, %v1197
        %v1630 = vpack.c.b16 %v1202, %v1198
        %v1631 = vpack.c.b16 %v1203, %v1199
        %v1632 = vpack.c.b16 %v1208, %v1204
        %v1633 = vpack.c.b16 %v1209, %v1205
        %v1634 = vpack.c.b16 %v1210, %v1206
        %v1635 = vpack.c.b16 %v1211, %v1207
        %v1636 = vpack.c.b16 %v1216, %v1212
        %v1637 = vpack.c.b16 %v1217, %v1213
        %v1638 = vpack.c.b16 %v1218, %v1214
        %v1639 = vpack.c.b16 %v1219, %v1215
        %v1640 = vpack.c.b16 %v1224, %v1220
        %v1641 = vpack.c.b16 %v1225, %v1221
        %v1642 = vpack.c.b16 %v1226, %v1222
        %v1643 = vpack.c.b16 %v1227, %v1223
        %v1644 = vpack.c.b16 %v1232, %v1228
        %v1645 = vpack.c.b16 %v1233, %v1229
        %v1646 = vpack.c.b16 %v1234, %v1230
        %v1647 = vpack.c.b16 %v1235, %v1231
        %v1648 = vpack.c.b16 %v1240, %v1236
        %v1649 = vpack.c.b16 %v1241, %v1237
        %v1650 = vpack.c.b16 %v1242, %v1238
        %v1651 = vpack.c.b16 %v1243, %v1239
        %v1652 = vpack.c.b16 %v1248, %v1244
        %v1653 = vpack.c.b16 %v1249, %v1245
        %v1654 = vpack.c.b16 %v1250, %v1246
        %v1655 = vpack.c.b16 %v1251, %v1247
        %v1656 = vpack.c.b16 %v1256, %v1252
        %v1657 = vpack.c.b16 %v1257, %v1253
        %v1658 = vpack.c.b16 %v1258, %v1254
        %v1659 = vpack.c.b16 %v1259, %v1255
        %v1660 = vpack.c.b16 %v1264, %v1260
        %v1661 = vpack.c.b16 %v1265, %v1261
        %v1662 = vpack.c.b16 %v1266, %v1262
        %v1663 = vpack.c.b16 %v1267, %v1263
        %v1664 = vpack.c.b16 %v1272, %v1268
        %v1665 = vpack.c.b16 %v1273, %v1269
        %v1666 = vpack.c.b16 %v1274, %v1270
        %v1667 = vpack.c.b16 %v1275, %v1271
        %v1668 = vpack.c.b16 %v1280, %v1276
        %v1669 = vpack.c.b16 %v1281, %v1277
        %v1670 = vpack.c.b16 %v1282, %v1278
        %v1671 = vpack.c.b16 %v1283, %v1279
        %v1672 = vpack.c.b16 %v1288, %v1284
        %v1673 = vpack.c.b16 %v1289, %v1285
        %v1674 = vpack.c.b16 %v1290, %v1286
        %v1675 = vpack.c.b16 %v1291, %v1287
        %v1676 = vpack.c.b16 %v1296, %v1292
        %v1677 = vpack.c.b16 %v1297, %v1293
        %v1678 = vpack.c.b16 %v1298, %v1294
        %v1679 = vpack.c.b16 %v1299, %v1295
        %v1680 = vpack.c.b16 %v1304, %v1300
        %v1681 = vpack.c.b16 %v1305, %v1301
        %v1682 = vpack.c.b16 %v1306, %v1302
        %v1683 = vpack.c.b16 %v1307, %v1303
        %v1684 = vpack.c.b16 %v1312, %v1308
        %v1685 = vpack.c.b16 %v1313, %v1309
        %v1686 = vpack.c.b16 %v1314, %v1310
        %v1687 = vpack.c.b16 %v1315, %v1311
        %v1688 = vpack.c.b16 %v1320, %v1316
        %v1689 = vpack.c.b16 %v1321, %v1317
        %v1690 = vpack.c.b16 %v1322, %v1318
        %v1691 = vpack.c.b16 %v1323, %v1319
        %v1692 = vpack.c.b16 %v1328, %v1324
        %v1693 = vpack.c.b16 %v1329, %v1325
        %v1694 = vpack.c.b16 %v1330, %v1326
        %v1695 = vpack.c.b16 %v1331, %v1327
        %v1696 = vpack.c.b16 %v1336, %v1332
        %v1697 = vpack.c.b16 %v1337, %v1333
        %v1698 = vpack.c.b16 %v1338, %v1334
        %v1699 = vpack.c.b16 %v1339, %v1335
        %v1700 = vpack.c.b16 %v1344, %v1340
        %v1701 = vpack.c.b16 %v1345, %v1341
        %v1702 = vpack.c.b16 %v1346, %v1342
        %v1703 = vpack.c.b16 %v1347, %v1343
        %v1704 = vpack.c.b16 %v1352, %v1348
        %v1705 = vpack.c.b16 %v1353, %v1349
        %v1706 = vpack.c.b16 %v1354, %v1350
        %v1707 = vpack.c.b16 %v1355, %v1351
        %v1708 = vpack.c.b16 %v1360, %v1356
        %v1709 = vpack.c.b16 %v1361, %v1357
        %v1710 = vpack.c.b16 %v1362, %v1358
        %v1711 = vpack.c.b16 %v1363, %v1359
        %v1712 = vpack.c.b16 %v1368, %v1364
        %v1713 = vpack.c.b16 %v1369, %v1365
        %v1714 = vpack.c.b16 %v1370, %v1366
        %v1715 = vpack.c.b16 %v1371, %v1367
        %v1716 = vpack.c.b16 %v1376, %v1372
        %v1717 = vpack.c.b16 %v1377, %v1373
        %v1718 = vpack.c.b16 %v1378, %v1374
        %v1719 = vpack.c.b16 %v1379, %v1375
        %v1720 = vpack.c.b16 %v1384, %v1380
        %v1721 = vpack.c.b16 %v1385, %v1381
        %v1722 = vpack.c.b16 %v1386, %v1382
        %v1723 = vpack.c.b16 %v1387, %v1383
        %v1724 = vpack.c.b16 %v1392, %v1388
        %v1725 = vpack.c.b16 %v1393, %v1389
        %v1726 = vpack.c.b16 %v1394, %v1390
        %v1727 = vpack.c.b16 %v1395, %v1391
        %v1728 = vpack.c.b16 %v1400, %v1396
        %v1729 = vpack.c.b16 %v1401, %v1397
        %v1730 = vpack.c.b16 %v1402, %v1398
        %v1731 = vpack.c.b16 %v1403, %v1399
        %v1732 = vpack.c.b16 %v1408, %v1404
        %v1733 = vpack.c.b16 %v1409, %v1405
        %v1734 = vpack.c.b16 %v1410, %v1406
        %v1735 = vpack.c.b16 %v1411, %v1407
        %v1736 = vpack.c.b16 %v1416, %v1412
        %v1737 = vpack.c.b16 %v1417, %v1413
        %v1738 = vpack.c.b16 %v1418, %v1414
        %v1739 = vpack.c.b16 %v1419, %v1415
        %v1740 = vpack.c.b16 %v1424, %v1420
        %v1741 = vpack.c.b16 %v1425, %v1421
        %v1742 = vpack.c.b16 %v1426, %v1422
        %v1743 = vpack.c.b16 %v1427, %v1423
        %v1744 = vpack.c.b16 %v1432, %v1428
        %v1745 = vpack.c.b16 %v1433, %v1429
        %v1746 = vpack.c.b16 %v1434, %v1430
        %v1747 = vpack.c.b16 %v1435, %v1431
        %v1748 = vpack.c.b16 %v1440, %v1436
        %v1749 = vpack.c.b16 %v1441, %v1437
        %v1750 = vpack.c.b16 %v1442, %v1438
        %v1751 = vpack.c.b16 %v1443, %v1439
        %v1752 = vpack.c.b16 %v1448, %v1444
        %v1753 = vpack.c.b16 %v1449, %v1445
        %v1754 = vpack.c.b16 %v1450, %v1446
        %v1755 = vpack.c.b16 %v1451, %v1447
        %v1756 = vpack.c.b16 %v1456, %v1452
        %v1757 = vpack.c.b16 %v1457, %v1453
        %v1758 = vpack.c.b16 %v1458, %v1454
        %v1759 = vpack.c.b16 %v1459, %v1455
        %v1760 = vpack.c.b16 %v1464, %v1460
        %v1761 = vpack.c.b16 %v1465, %v1461
        %v1762 = vpack.c.b16 %v1466, %v1462
        %v1763 = vpack.c.b16 %v1467, %v1463
        %v1764 = vpack.c.b16 %v1472, %v1468
        %v1765 = vpack.c.b16 %v1473, %v1469
        %v1766 = vpack.c.b16 %v1474, %v1470
        %v1767 = vpack.c.b16 %v1475, %v1471
        %v1768 = vpack.c.b16 %v1480, %v1476
        %v1769 = vpack.c.b16 %v1481, %v1477
        %v1770 = vpack.c.b16 %v1482, %v1478
        %v1771 = vpack.c.b16 %v1483, %v1479
        %v1772 = vpack.c.b16 %v1488, %v1484
        %v1773 = vpack.c.b16 %v1489, %v1485
        %v1774 = vpack.c.b16 %v1490, %v1486
        %v1775 = vpack.c.b16 %v1491, %v1487
        %v1776 = vpack.c.b16 %v1496, %v1492
        %v1777 = vpack.c.b16 %v1497, %v1493
        %v1778 = vpack.c.b16 %v1498, %v1494
        %v1779 = vpack.c.b16 %v1499, %v1495
        %v1780 = vpack.c.b16 %v1504, %v1500
        %v1781 = vpack.c.b16 %v1505, %v1501
        %v1782 = vpack.c.b16 %v1506, %v1502
        %v1783 = vpack.c.b16 %v1507, %v1503
        %v1784 = vpack.c.b16 %v1512, %v1508
        %v1785 = vpack.c.b16 %v1513, %v1509
        %v1786 = vpack.c.b16 %v1514, %v1510
        %v1787 = vpack.c.b16 %v1515, %v1511
        %v1788 = vpack.c.b16 %v1520, %v1516
        %v1789 = vpack.c.b16 %v1521, %v1517
        %v1790 = vpack.c.b16 %v1522, %v1518
        %v1791 = vpack.c.b16 %v1523, %v1519
        %v1792 = vpack.c.b16 %v1528, %v1524
        %v1793 = vpack.c.b16 %v1529, %v1525
        %v1794 = vpack.c.b16 %v1530, %v1526
        %v1795 = vpack.c.b16 %v1531, %v1527
        %v1796 = vpack.c.b16 %v1536, %v1532
        %v1797 = vpack.c.b16 %v1537, %v1533
        %v1798 = vpack.c.b16 %v1538, %v1534
        %v1799 = vpack.c.b16 %v1539, %v1535
        %v1800 = vpack.c.b16 %v1544, %v1540
        %v1801 = vpack.c.b16 %v1545, %v1541
        %v1802 = vpack.c.b16 %v1546, %v1542
        %v1803 = vpack.c.b16 %v1547, %v1543
        %2060 = vmatpush.bf16.msra.mxu0 %v1576
        %2061 = vmatpush.bf16.msra.mxu0 %v1572
        %2062 = vmatpush.bf16.msra.mxu0 %v1568
        %2063 = vmatpush.bf16.msra.mxu0 %v1564
        %2064 = vmatpush.bf16.msra.mxu0 %v1560
        %2065 = vmatpush.bf16.msra.mxu0 %v1556
        %2066 = vmatpush.bf16.msra.mxu0 %v1552
        %2067 = vmatpush.bf16.msra.mxu0 %v1548
        %2068 = vmatmul.bf16.gmra.mxu0 %v764
        %v2069 = vpop.f32.mrf.mxu0
        %v2070 = vadd.f32 %v744, %v2069
        %v2071 = vpop.f32.mrf.mxu0
        %2072 = vdwg.mxu0
        %2073 = vmatpush.bf16.msra.mxu0 %v1608
        %2074 = vmatpush.bf16.msra.mxu0 %v1604
        %2075 = vmatpush.bf16.msra.mxu0 %v1600
        %2076 = vmatpush.bf16.msra.mxu0 %v1596
        %2077 = vmatpush.bf16.msra.mxu0 %v1592
        %2078 = vmatpush.bf16.msra.mxu0 %v1588
        %2079 = vmatpush.bf16.msra.mxu0 %v1584
        %2080 = vmatpush.bf16.msra.mxu0 %v1580
        %2081 = vmatmul.bf16.gmra.mxu0 %v765
        %v2082 = vpop.f32.mrf.mxu0
        %v2083 = vadd.f32 %v2070, %v2082
        %v2084 = vpop.f32.mrf.mxu0
        %2085 = vdwg.mxu0
        %2086 = vmatpush.bf16.msra.mxu0 %v1640
        %2087 = vmatpush.bf16.msra.mxu0 %v1636
        %2088 = vmatpush.bf16.msra.mxu0 %v1632
        %2089 = vmatpush.bf16.msra.mxu0 %v1628
        %2090 = vmatpush.bf16.msra.mxu0 %v1624
        %2091 = vmatpush.bf16.msra.mxu0 %v1620
        %2092 = vmatpush.bf16.msra.mxu0 %v1616
        %2093 = vmatpush.bf16.msra.mxu0 %v1612
        %2094 = vmatmul.bf16.gmra.mxu0 %v766
        %v2095 = vpop.f32.mrf.mxu0
        %v2096 = vadd.f32 %v2083, %v2095
        %v2097 = vpop.f32.mrf.mxu0
        %2098 = vdwg.mxu0
        %2099 = vmatpush.bf16.msra.mxu0 %v1672
        %2100 = vmatpush.bf16.msra.mxu0 %v1668
        %2101 = vmatpush.bf16.msra.mxu0 %v1664
        %2102 = vmatpush.bf16.msra.mxu0 %v1660
        %2103 = vmatpush.bf16.msra.mxu0 %v1656
        %2104 = vmatpush.bf16.msra.mxu0 %v1652
        %2105 = vmatpush.bf16.msra.mxu0 %v1648
        %2106 = vmatpush.bf16.msra.mxu0 %v1644
        %2107 = vmatmul.bf16.gmra.mxu0 %v767
        %v2108 = vpop.f32.mrf.mxu0
        %v2109 = vadd.f32 %v2096, %v2108
        %v2110 = vpop.f32.mrf.mxu0
        %2111 = vdwg.mxu0
        %2112 = vmatpush.bf16.msra.mxu0 %v1704
        %2113 = vmatpush.bf16.msra.mxu0 %v1700
        %2114 = vmatpush.bf16.msra.mxu0 %v1696
        %2115 = vmatpush.bf16.msra.mxu0 %v1692
        %2116 = vmatpush.bf16.msra.mxu0 %v1688
        %2117 = vmatpush.bf16.msra.mxu0 %v1684
        %2118 = vmatpush.bf16.msra.mxu0 %v1680
        %2119 = vmatpush.bf16.msra.mxu0 %v1676
        %2120 = vmatmul.bf16.gmra.mxu0 %v768
        %v2121 = vpop.f32.mrf.mxu0
        %v2122 = vadd.f32 %v2109, %v2121
        %v2123 = vpop.f32.mrf.mxu0
        %2124 = vdwg.mxu0
        %2125 = vmatpush.bf16.msra.mxu0 %v1736
        %2126 = vmatpush.bf16.msra.mxu0 %v1732
        %2127 = vmatpush.bf16.msra.mxu0 %v1728
        %2128 = vmatpush.bf16.msra.mxu0 %v1724
        %2129 = vmatpush.bf16.msra.mxu0 %v1720
        %2130 = vmatpush.bf16.msra.mxu0 %v1716
        %2131 = vmatpush.bf16.msra.mxu0 %v1712
        %2132 = vmatpush.bf16.msra.mxu0 %v1708
        %2133 = vmatmul.bf16.gmra.mxu0 %v769
        %v2134 = vpop.f32.mrf.mxu0
        %v2135 = vadd.f32 %v2122, %v2134
        %v2136 = vpop.f32.mrf.mxu0
        %2137 = vdwg.mxu0
        %2138 = vmatpush.bf16.msra.mxu0 %v1768
        %2139 = vmatpush.bf16.msra.mxu0 %v1764
        %2140 = vmatpush.bf16.msra.mxu0 %v1760
        %2141 = vmatpush.bf16.msra.mxu0 %v1756
        %2142 = vmatpush.bf16.msra.mxu0 %v1752
        %2143 = vmatpush.bf16.msra.mxu0 %v1748
        %2144 = vmatpush.bf16.msra.mxu0 %v1744
        %2145 = vmatpush.bf16.msra.mxu0 %v1740
        %2146 = vmatmul.bf16.gmra.mxu0 %v770
        %v2147 = vpop.f32.mrf.mxu0
        %v2148 = vadd.f32 %v2135, %v2147
        %v2149 = vpop.f32.mrf.mxu0
        %2150 = vdwg.mxu0
        %2151 = vmatpush.bf16.msra.mxu0 %v1800
        %2152 = vmatpush.bf16.msra.mxu0 %v1796
        %2153 = vmatpush.bf16.msra.mxu0 %v1792
        %2154 = vmatpush.bf16.msra.mxu0 %v1788
        %2155 = vmatpush.bf16.msra.mxu0 %v1784
        %2156 = vmatpush.bf16.msra.mxu0 %v1780
        %2157 = vmatpush.bf16.msra.mxu0 %v1776
        %2158 = vmatpush.bf16.msra.mxu0 %v1772
        %2159 = vmatmul.bf16.gmra.mxu0 %v771
        %v2160 = vpop.f32.mrf.mxu0
        %v2161 = vadd.f32 %v2148, %v2160
        %v2162 = vpop.f32.mrf.mxu0
        %2163 = vdwg.mxu0
        %2164 = vmatpush.bf16.msra.mxu0 %v1577
        %2165 = vmatpush.bf16.msra.mxu0 %v1573
        %2166 = vmatpush.bf16.msra.mxu0 %v1569
        %2167 = vmatpush.bf16.msra.mxu0 %v1565
        %2168 = vmatpush.bf16.msra.mxu0 %v1561
        %2169 = vmatpush.bf16.msra.mxu0 %v1557
        %2170 = vmatpush.bf16.msra.mxu0 %v1553
        %2171 = vmatpush.bf16.msra.mxu0 %v1549
        %2172 = vmatmul.bf16.gmra.mxu0 %v764
        %v2173 = vpop.f32.mrf.mxu0
        %v2174 = vadd.f32 %v745, %v2173
        %v2175 = vpop.f32.mrf.mxu0
        %2176 = vdwg.mxu0
        %2177 = vmatpush.bf16.msra.mxu0 %v1609
        %2178 = vmatpush.bf16.msra.mxu0 %v1605
        %2179 = vmatpush.bf16.msra.mxu0 %v1601
        %2180 = vmatpush.bf16.msra.mxu0 %v1597
        %2181 = vmatpush.bf16.msra.mxu0 %v1593
        %2182 = vmatpush.bf16.msra.mxu0 %v1589
        %2183 = vmatpush.bf16.msra.mxu0 %v1585
        %2184 = vmatpush.bf16.msra.mxu0 %v1581
        %2185 = vmatmul.bf16.gmra.mxu0 %v765
        %v2186 = vpop.f32.mrf.mxu0
        %v2187 = vadd.f32 %v2174, %v2186
        %v2188 = vpop.f32.mrf.mxu0
        %2189 = vdwg.mxu0
        %2190 = vmatpush.bf16.msra.mxu0 %v1641
        %2191 = vmatpush.bf16.msra.mxu0 %v1637
        %2192 = vmatpush.bf16.msra.mxu0 %v1633
        %2193 = vmatpush.bf16.msra.mxu0 %v1629
        %2194 = vmatpush.bf16.msra.mxu0 %v1625
        %2195 = vmatpush.bf16.msra.mxu0 %v1621
        %2196 = vmatpush.bf16.msra.mxu0 %v1617
        %2197 = vmatpush.bf16.msra.mxu0 %v1613
        %2198 = vmatmul.bf16.gmra.mxu0 %v766
        %v2199 = vpop.f32.mrf.mxu0
        %v2200 = vadd.f32 %v2187, %v2199
        %v2201 = vpop.f32.mrf.mxu0
        %2202 = vdwg.mxu0
        %2203 = vmatpush.bf16.msra.mxu0 %v1673
        %2204 = vmatpush.bf16.msra.mxu0 %v1669
        %2205 = vmatpush.bf16.msra.mxu0 %v1665
        %2206 = vmatpush.bf16.msra.mxu0 %v1661
        %2207 = vmatpush.bf16.msra.mxu0 %v1657
        %2208 = vmatpush.bf16.msra.mxu0 %v1653
        %2209 = vmatpush.bf16.msra.mxu0 %v1649
        %2210 = vmatpush.bf16.msra.mxu0 %v1645
        %2211 = vmatmul.bf16.gmra.mxu0 %v767
        %v2212 = vpop.f32.mrf.mxu0
        %v2213 = vadd.f32 %v2200, %v2212
        %v2214 = vpop.f32.mrf.mxu0
        %2215 = vdwg.mxu0
        %2216 = vmatpush.bf16.msra.mxu0 %v1705
        %2217 = vmatpush.bf16.msra.mxu0 %v1701
        %2218 = vmatpush.bf16.msra.mxu0 %v1697
        %2219 = vmatpush.bf16.msra.mxu0 %v1693
        %2220 = vmatpush.bf16.msra.mxu0 %v1689
        %2221 = vmatpush.bf16.msra.mxu0 %v1685
        %2222 = vmatpush.bf16.msra.mxu0 %v1681
        %2223 = vmatpush.bf16.msra.mxu0 %v1677
        %2224 = vmatmul.bf16.gmra.mxu0 %v768
        %v2225 = vpop.f32.mrf.mxu0
        %v2226 = vadd.f32 %v2213, %v2225
        %v2227 = vpop.f32.mrf.mxu0
        %2228 = vdwg.mxu0
        %2229 = vmatpush.bf16.msra.mxu0 %v1737
        %2230 = vmatpush.bf16.msra.mxu0 %v1733
        %2231 = vmatpush.bf16.msra.mxu0 %v1729
        %2232 = vmatpush.bf16.msra.mxu0 %v1725
        %2233 = vmatpush.bf16.msra.mxu0 %v1721
        %2234 = vmatpush.bf16.msra.mxu0 %v1717
        %2235 = vmatpush.bf16.msra.mxu0 %v1713
        %2236 = vmatpush.bf16.msra.mxu0 %v1709
        %2237 = vmatmul.bf16.gmra.mxu0 %v769
        %v2238 = vpop.f32.mrf.mxu0
        %v2239 = vadd.f32 %v2226, %v2238
        %v2240 = vpop.f32.mrf.mxu0
        %2241 = vdwg.mxu0
        %2242 = vmatpush.bf16.msra.mxu0 %v1769
        %2243 = vmatpush.bf16.msra.mxu0 %v1765
        %2244 = vmatpush.bf16.msra.mxu0 %v1761
        %2245 = vmatpush.bf16.msra.mxu0 %v1757
        %2246 = vmatpush.bf16.msra.mxu0 %v1753
        %2247 = vmatpush.bf16.msra.mxu0 %v1749
        %2248 = vmatpush.bf16.msra.mxu0 %v1745
        %2249 = vmatpush.bf16.msra.mxu0 %v1741
        %2250 = vmatmul.bf16.gmra.mxu0 %v770
        %v2251 = vpop.f32.mrf.mxu0
        %v2252 = vadd.f32 %v2239, %v2251
        %v2253 = vpop.f32.mrf.mxu0
        %2254 = vdwg.mxu0
        %2255 = vmatpush.bf16.msra.mxu0 %v1801
        %2256 = vmatpush.bf16.msra.mxu0 %v1797
        %2257 = vmatpush.bf16.msra.mxu0 %v1793
        %2258 = vmatpush.bf16.msra.mxu0 %v1789
        %2259 = vmatpush.bf16.msra.mxu0 %v1785
        %2260 = vmatpush.bf16.msra.mxu0 %v1781
        %2261 = vmatpush.bf16.msra.mxu0 %v1777
        %2262 = vmatpush.bf16.msra.mxu0 %v1773
        %2263 = vmatmul.bf16.gmra.mxu0 %v771
        %v2264 = vpop.f32.mrf.mxu0
        %v2265 = vadd.f32 %v2252, %v2264
        %v2266 = vpop.f32.mrf.mxu0
        %2267 = vdwg.mxu0
        %2268 = vmatpush.bf16.msra.mxu0 %v1578
        %2269 = vmatpush.bf16.msra.mxu0 %v1574
        %2270 = vmatpush.bf16.msra.mxu0 %v1570
        %2271 = vmatpush.bf16.msra.mxu0 %v1566
        %2272 = vmatpush.bf16.msra.mxu0 %v1562
        %2273 = vmatpush.bf16.msra.mxu0 %v1558
        %2274 = vmatpush.bf16.msra.mxu0 %v1554
        %2275 = vmatpush.bf16.msra.mxu0 %v1550
        %2276 = vmatmul.bf16.gmra.mxu0 %v764
        %v2277 = vpop.f32.mrf.mxu0
        %v2278 = vadd.f32 %v746, %v2277
        %v2279 = vpop.f32.mrf.mxu0
        %2280 = vdwg.mxu0
        %2281 = vmatpush.bf16.msra.mxu0 %v1610
        %2282 = vmatpush.bf16.msra.mxu0 %v1606
        %2283 = vmatpush.bf16.msra.mxu0 %v1602
        %2284 = vmatpush.bf16.msra.mxu0 %v1598
        %2285 = vmatpush.bf16.msra.mxu0 %v1594
        %2286 = vmatpush.bf16.msra.mxu0 %v1590
        %2287 = vmatpush.bf16.msra.mxu0 %v1586
        %2288 = vmatpush.bf16.msra.mxu0 %v1582
        %2289 = vmatmul.bf16.gmra.mxu0 %v765
        %v2290 = vpop.f32.mrf.mxu0
        %v2291 = vadd.f32 %v2278, %v2290
        %v2292 = vpop.f32.mrf.mxu0
        %2293 = vdwg.mxu0
        %2294 = vmatpush.bf16.msra.mxu0 %v1642
        %2295 = vmatpush.bf16.msra.mxu0 %v1638
        %2296 = vmatpush.bf16.msra.mxu0 %v1634
        %2297 = vmatpush.bf16.msra.mxu0 %v1630
        %2298 = vmatpush.bf16.msra.mxu0 %v1626
        %2299 = vmatpush.bf16.msra.mxu0 %v1622
        %2300 = vmatpush.bf16.msra.mxu0 %v1618
        %2301 = vmatpush.bf16.msra.mxu0 %v1614
        %2302 = vmatmul.bf16.gmra.mxu0 %v766
        %v2303 = vpop.f32.mrf.mxu0
        %v2304 = vadd.f32 %v2291, %v2303
        %v2305 = vpop.f32.mrf.mxu0
        %2306 = vdwg.mxu0
        %2307 = vmatpush.bf16.msra.mxu0 %v1674
        %2308 = vmatpush.bf16.msra.mxu0 %v1670
        %2309 = vmatpush.bf16.msra.mxu0 %v1666
        %2310 = vmatpush.bf16.msra.mxu0 %v1662
        %2311 = vmatpush.bf16.msra.mxu0 %v1658
        %2312 = vmatpush.bf16.msra.mxu0 %v1654
        %2313 = vmatpush.bf16.msra.mxu0 %v1650
        %2314 = vmatpush.bf16.msra.mxu0 %v1646
        %2315 = vmatmul.bf16.gmra.mxu0 %v767
        %v2316 = vpop.f32.mrf.mxu0
        %v2317 = vadd.f32 %v2304, %v2316
        %v2318 = vpop.f32.mrf.mxu0
        %2319 = vdwg.mxu0
        %2320 = vmatpush.bf16.msra.mxu0 %v1706
        %2321 = vmatpush.bf16.msra.mxu0 %v1702
        %2322 = vmatpush.bf16.msra.mxu0 %v1698
        %2323 = vmatpush.bf16.msra.mxu0 %v1694
        %2324 = vmatpush.bf16.msra.mxu0 %v1690
        %2325 = vmatpush.bf16.msra.mxu0 %v1686
        %2326 = vmatpush.bf16.msra.mxu0 %v1682
        %2327 = vmatpush.bf16.msra.mxu0 %v1678
        %2328 = vmatmul.bf16.gmra.mxu0 %v768
        %v2329 = vpop.f32.mrf.mxu0
        %v2330 = vadd.f32 %v2317, %v2329
        %v2331 = vpop.f32.mrf.mxu0
        %2332 = vdwg.mxu0
        %2333 = vmatpush.bf16.msra.mxu0 %v1738
        %2334 = vmatpush.bf16.msra.mxu0 %v1734
        %2335 = vmatpush.bf16.msra.mxu0 %v1730
        %2336 = vmatpush.bf16.msra.mxu0 %v1726
        %2337 = vmatpush.bf16.msra.mxu0 %v1722
        %2338 = vmatpush.bf16.msra.mxu0 %v1718
        %2339 = vmatpush.bf16.msra.mxu0 %v1714
        %2340 = vmatpush.bf16.msra.mxu0 %v1710
        %2341 = vmatmul.bf16.gmra.mxu0 %v769
        %v2342 = vpop.f32.mrf.mxu0
        %v2343 = vadd.f32 %v2330, %v2342
        %v2344 = vpop.f32.mrf.mxu0
        %2345 = vdwg.mxu0
        %2346 = vmatpush.bf16.msra.mxu0 %v1770
        %2347 = vmatpush.bf16.msra.mxu0 %v1766
        %2348 = vmatpush.bf16.msra.mxu0 %v1762
        %2349 = vmatpush.bf16.msra.mxu0 %v1758
        %2350 = vmatpush.bf16.msra.mxu0 %v1754
        %2351 = vmatpush.bf16.msra.mxu0 %v1750
        %2352 = vmatpush.bf16.msra.mxu0 %v1746
        %2353 = vmatpush.bf16.msra.mxu0 %v1742
        %2354 = vmatmul.bf16.gmra.mxu0 %v770
        %v2355 = vpop.f32.mrf.mxu0
        %v2356 = vadd.f32 %v2343, %v2355
        %v2357 = vpop.f32.mrf.mxu0
        %2358 = vdwg.mxu0
        %2359 = vmatpush.bf16.msra.mxu0 %v1802
        %2360 = vmatpush.bf16.msra.mxu0 %v1798
        %2361 = vmatpush.bf16.msra.mxu0 %v1794
        %2362 = vmatpush.bf16.msra.mxu0 %v1790
        %2363 = vmatpush.bf16.msra.mxu0 %v1786
        %2364 = vmatpush.bf16.msra.mxu0 %v1782
        %2365 = vmatpush.bf16.msra.mxu0 %v1778
        %2366 = vmatpush.bf16.msra.mxu0 %v1774
        %2367 = vmatmul.bf16.gmra.mxu0 %v771
        %v2368 = vpop.f32.mrf.mxu0
        %v2369 = vadd.f32 %v2356, %v2368
        %v2370 = vpop.f32.mrf.mxu0
        %2371 = vdwg.mxu0
        %2372 = vmatpush.bf16.msra.mxu0 %v1579
        %2373 = vmatpush.bf16.msra.mxu0 %v1575
        %2374 = vmatpush.bf16.msra.mxu0 %v1571
        %2375 = vmatpush.bf16.msra.mxu0 %v1567
        %2376 = vmatpush.bf16.msra.mxu0 %v1563
        %2377 = vmatpush.bf16.msra.mxu0 %v1559
        %2378 = vmatpush.bf16.msra.mxu0 %v1555
        %2379 = vmatpush.bf16.msra.mxu0 %v1551
        %2380 = vmatmul.bf16.gmra.mxu0 %v764
        %v2381 = vpop.f32.mrf.mxu0
        %v2382 = vadd.f32 %v747, %v2381
        %v2383 = vpop.f32.mrf.mxu0
        %2384 = vdwg.mxu0
        %2385 = vmatpush.bf16.msra.mxu0 %v1611
        %2386 = vmatpush.bf16.msra.mxu0 %v1607
        %2387 = vmatpush.bf16.msra.mxu0 %v1603
        %2388 = vmatpush.bf16.msra.mxu0 %v1599
        %2389 = vmatpush.bf16.msra.mxu0 %v1595
        %2390 = vmatpush.bf16.msra.mxu0 %v1591
        %2391 = vmatpush.bf16.msra.mxu0 %v1587
        %2392 = vmatpush.bf16.msra.mxu0 %v1583
        %2393 = vmatmul.bf16.gmra.mxu0 %v765
        %v2394 = vpop.f32.mrf.mxu0
        %v2395 = vadd.f32 %v2382, %v2394
        %v2396 = vpop.f32.mrf.mxu0
        %2397 = vdwg.mxu0
        %2398 = vmatpush.bf16.msra.mxu0 %v1643
        %2399 = vmatpush.bf16.msra.mxu0 %v1639
        %2400 = vmatpush.bf16.msra.mxu0 %v1635
        %2401 = vmatpush.bf16.msra.mxu0 %v1631
        %2402 = vmatpush.bf16.msra.mxu0 %v1627
        %2403 = vmatpush.bf16.msra.mxu0 %v1623
        %2404 = vmatpush.bf16.msra.mxu0 %v1619
        %2405 = vmatpush.bf16.msra.mxu0 %v1615
        %2406 = vmatmul.bf16.gmra.mxu0 %v766
        %v2407 = vpop.f32.mrf.mxu0
        %v2408 = vadd.f32 %v2395, %v2407
        %v2409 = vpop.f32.mrf.mxu0
        %2410 = vdwg.mxu0
        %2411 = vmatpush.bf16.msra.mxu0 %v1675
        %2412 = vmatpush.bf16.msra.mxu0 %v1671
        %2413 = vmatpush.bf16.msra.mxu0 %v1667
        %2414 = vmatpush.bf16.msra.mxu0 %v1663
        %2415 = vmatpush.bf16.msra.mxu0 %v1659
        %2416 = vmatpush.bf16.msra.mxu0 %v1655
        %2417 = vmatpush.bf16.msra.mxu0 %v1651
        %2418 = vmatpush.bf16.msra.mxu0 %v1647
        %2419 = vmatmul.bf16.gmra.mxu0 %v767
        %v2420 = vpop.f32.mrf.mxu0
        %v2421 = vadd.f32 %v2408, %v2420
        %v2422 = vpop.f32.mrf.mxu0
        %2423 = vdwg.mxu0
        %2424 = vmatpush.bf16.msra.mxu0 %v1707
        %2425 = vmatpush.bf16.msra.mxu0 %v1703
        %2426 = vmatpush.bf16.msra.mxu0 %v1699
        %2427 = vmatpush.bf16.msra.mxu0 %v1695
        %2428 = vmatpush.bf16.msra.mxu0 %v1691
        %2429 = vmatpush.bf16.msra.mxu0 %v1687
        %2430 = vmatpush.bf16.msra.mxu0 %v1683
        %2431 = vmatpush.bf16.msra.mxu0 %v1679
        %2432 = vmatmul.bf16.gmra.mxu0 %v768
        %v2433 = vpop.f32.mrf.mxu0
        %v2434 = vadd.f32 %v2421, %v2433
        %v2435 = vpop.f32.mrf.mxu0
        %2436 = vdwg.mxu0
        %2437 = vmatpush.bf16.msra.mxu0 %v1739
        %2438 = vmatpush.bf16.msra.mxu0 %v1735
        %2439 = vmatpush.bf16.msra.mxu0 %v1731
        %2440 = vmatpush.bf16.msra.mxu0 %v1727
        %2441 = vmatpush.bf16.msra.mxu0 %v1723
        %2442 = vmatpush.bf16.msra.mxu0 %v1719
        %2443 = vmatpush.bf16.msra.mxu0 %v1715
        %2444 = vmatpush.bf16.msra.mxu0 %v1711
        %2445 = vmatmul.bf16.gmra.mxu0 %v769
        %v2446 = vpop.f32.mrf.mxu0
        %v2447 = vadd.f32 %v2434, %v2446
        %v2448 = vpop.f32.mrf.mxu0
        %2449 = vdwg.mxu0
        %2450 = vmatpush.bf16.msra.mxu0 %v1771
        %2451 = vmatpush.bf16.msra.mxu0 %v1767
        %2452 = vmatpush.bf16.msra.mxu0 %v1763
        %2453 = vmatpush.bf16.msra.mxu0 %v1759
        %2454 = vmatpush.bf16.msra.mxu0 %v1755
        %2455 = vmatpush.bf16.msra.mxu0 %v1751
        %2456 = vmatpush.bf16.msra.mxu0 %v1747
        %2457 = vmatpush.bf16.msra.mxu0 %v1743
        %2458 = vmatmul.bf16.gmra.mxu0 %v770
        %v2459 = vpop.f32.mrf.mxu0
        %v2460 = vadd.f32 %v2447, %v2459
        %v2461 = vpop.f32.mrf.mxu0
        %2462 = vdwg.mxu0
        %2463 = vmatpush.bf16.msra.mxu0 %v1803
        %2464 = vmatpush.bf16.msra.mxu0 %v1799
        %2465 = vmatpush.bf16.msra.mxu0 %v1795
        %2466 = vmatpush.bf16.msra.mxu0 %v1791
        %2467 = vmatpush.bf16.msra.mxu0 %v1787
        %2468 = vmatpush.bf16.msra.mxu0 %v1783
        %2469 = vmatpush.bf16.msra.mxu0 %v1779
        %2470 = vmatpush.bf16.msra.mxu0 %v1775
        %2471 = vmatmul.bf16.gmra.mxu0 %v771
        %v2472 = vpop.f32.mrf.mxu0
        %v2473 = vadd.f32 %v2460, %v2472
        %v2474 = vpop.f32.mrf.mxu0
        %2475 = vdwg.mxu0
        %v2476 = vpack.c.bf16 %v2161, %v2161
        %v2477 = vpack.c.bf16 %v2265, %v2265
        %v2478 = vpack.c.bf16 %v2369, %v2369
        %v2479 = vpack.c.bf16 %v2473, %v2473
        %v2480 = vld [vmem:[%s351] sm:$0x1]
        %v2482 = vperm.slane %v2480, 0
        %v2548 = vunpack.c.l.b16 %v678
        %v2549 = vunpack.c.l.b16 %v679
        %v2550 = vunpack.c.l.b16 %v680
        %v2551 = vunpack.c.l.b16 %v681
        %v2552 = vunpack.c.l.b16 %v682
        %v2553 = vunpack.c.l.b16 %v683
        %v2554 = vunpack.c.l.b16 %v684
        %v2555 = vunpack.c.l.b16 %v685
        %v2556 = vunpack.c.l.b16 %v686
        %v2557 = vunpack.c.l.b16 %v687
        %v2558 = vunpack.c.l.b16 %v688
        %v2559 = vunpack.c.l.b16 %v689
        %v2560 = vunpack.c.l.b16 %v690
        %v2561 = vunpack.c.l.b16 %v691
        %v2562 = vunpack.c.l.b16 %v692
        %v2563 = vunpack.c.l.b16 %v693
        %v2564 = vunpack.c.l.b16 %v694
        %v2565 = vunpack.c.l.b16 %v695
        %v2566 = vunpack.c.l.b16 %v696
        %v2567 = vunpack.c.l.b16 %v697
        %v2568 = vunpack.c.l.b16 %v698
        %v2569 = vunpack.c.l.b16 %v699
        %v2570 = vunpack.c.l.b16 %v700
        %v2571 = vunpack.c.l.b16 %v701
        %v2572 = vunpack.c.l.b16 %v702
        %v2573 = vunpack.c.l.b16 %v703
        %v2574 = vunpack.c.l.b16 %v704
        %v2575 = vunpack.c.l.b16 %v705
        %v2576 = vunpack.c.l.b16 %v706
        %v2577 = vunpack.c.l.b16 %v707
        %v2578 = vunpack.c.l.b16 %v708
        %v2579 = vunpack.c.l.b16 %v709
        %v2580 = vunpack.c.l.b16 %v710
        %v2581 = vunpack.c.l.b16 %v711
        %v2582 = vunpack.c.l.b16 %v712
        %v2583 = vunpack.c.l.b16 %v713
        %v2584 = vunpack.c.l.b16 %v714
        %v2585 = vunpack.c.l.b16 %v715
        %v2586 = vunpack.c.l.b16 %v716
        %v2587 = vunpack.c.l.b16 %v717
        %v2588 = vunpack.c.l.b16 %v718
        %v2589 = vunpack.c.l.b16 %v719
        %v2590 = vunpack.c.l.b16 %v720
        %v2591 = vunpack.c.l.b16 %v721
        %v2592 = vunpack.c.l.b16 %v722
        %v2593 = vunpack.c.l.b16 %v723
        %v2594 = vunpack.c.l.b16 %v724
        %v2595 = vunpack.c.l.b16 %v725
        %v2596 = vunpack.c.l.b16 %v726
        %v2597 = vunpack.c.l.b16 %v727
        %v2598 = vunpack.c.l.b16 %v728
        %v2599 = vunpack.c.l.b16 %v729
        %v2600 = vunpack.c.l.b16 %v730
        %v2601 = vunpack.c.l.b16 %v731
        %v2602 = vunpack.c.l.b16 %v732
        %v2603 = vunpack.c.l.b16 %v733
        %v2604 = vunpack.c.l.b16 %v734
        %v2605 = vunpack.c.l.b16 %v735
        %v2606 = vunpack.c.l.b16 %v736
        %v2607 = vunpack.c.l.b16 %v737
        %v2608 = vunpack.c.l.b16 %v738
        %v2609 = vunpack.c.l.b16 %v739
        %v2610 = vunpack.c.l.b16 %v740
        %v2611 = vunpack.c.l.b16 %v741
        %v2612 = vpack.c.b16 %v2549, %v2548
        %v2613 = vpack.c.b16 %v2551, %v2550
        %v2614 = vpack.c.b16 %v2553, %v2552
        %v2615 = vpack.c.b16 %v2555, %v2554
        %v2616 = vpack.c.b16 %v2557, %v2556
        %v2617 = vpack.c.b16 %v2559, %v2558
        %v2618 = vpack.c.b16 %v2561, %v2560
        %v2619 = vpack.c.b16 %v2563, %v2562
        %v2620 = vpack.c.b16 %v2565, %v2564
        %v2621 = vpack.c.b16 %v2567, %v2566
        %v2622 = vpack.c.b16 %v2569, %v2568
        %v2623 = vpack.c.b16 %v2571, %v2570
        %v2624 = vpack.c.b16 %v2573, %v2572
        %v2625 = vpack.c.b16 %v2575, %v2574
        %v2626 = vpack.c.b16 %v2577, %v2576
        %v2627 = vpack.c.b16 %v2579, %v2578
        %v2628 = vpack.c.b16 %v2581, %v2580
        %v2629 = vpack.c.b16 %v2583, %v2582
        %v2630 = vpack.c.b16 %v2585, %v2584
        %v2631 = vpack.c.b16 %v2587, %v2586
        %v2632 = vpack.c.b16 %v2589, %v2588
        %v2633 = vpack.c.b16 %v2591, %v2590
        %v2634 = vpack.c.b16 %v2593, %v2592
        %v2635 = vpack.c.b16 %v2595, %v2594
        %v2636 = vpack.c.b16 %v2597, %v2596
        %v2637 = vpack.c.b16 %v2599, %v2598
        %v2638 = vpack.c.b16 %v2601, %v2600
        %v2639 = vpack.c.b16 %v2603, %v2602
        %v2640 = vpack.c.b16 %v2605, %v2604
        %v2641 = vpack.c.b16 %v2607, %v2606
        %v2642 = vpack.c.b16 %v2609, %v2608
        %v2643 = vpack.c.b16 %v2611, %v2610
        %2676 = vmatpush.bf16.msra.mxu0 %v2619
        %2677 = vmatpush.bf16.msra.mxu0 %v2618
        %2678 = vmatpush.bf16.msra.mxu0 %v2617
        %2679 = vmatpush.bf16.msra.mxu0 %v2616
        %2680 = vmatpush.bf16.msra.mxu0 %v2615
        %2681 = vmatpush.bf16.msra.mxu0 %v2614
        %2682 = vmatpush.bf16.msra.mxu0 %v2613
        %2683 = vmatpush.bf16.msra.mxu0 %v2612
        %2684 = vmatmul.bf16.gmra.mxu0 %v2476
        %v2685 = vpop.f32.mrf.mxu0
        %v2686 = vadd.f32 %v2482, %v2685
        %v2687 = vpop.f32.mrf.mxu0
        %2688 = vdwg.mxu0
        %2689 = vmatpush.bf16.msra.mxu0 %v2627
        %2690 = vmatpush.bf16.msra.mxu0 %v2626
        %2691 = vmatpush.bf16.msra.mxu0 %v2625
        %2692 = vmatpush.bf16.msra.mxu0 %v2624
        %2693 = vmatpush.bf16.msra.mxu0 %v2623
        %2694 = vmatpush.bf16.msra.mxu0 %v2622
        %2695 = vmatpush.bf16.msra.mxu0 %v2621
        %2696 = vmatpush.bf16.msra.mxu0 %v2620
        %2697 = vmatmul.bf16.gmra.mxu0 %v2477
        %v2698 = vpop.f32.mrf.mxu0
        %v2699 = vadd.f32 %v2686, %v2698
        %v2700 = vpop.f32.mrf.mxu0
        %2701 = vdwg.mxu0
        %2702 = vmatpush.bf16.msra.mxu0 %v2635
        %2703 = vmatpush.bf16.msra.mxu0 %v2634
        %2704 = vmatpush.bf16.msra.mxu0 %v2633
        %2705 = vmatpush.bf16.msra.mxu0 %v2632
        %2706 = vmatpush.bf16.msra.mxu0 %v2631
        %2707 = vmatpush.bf16.msra.mxu0 %v2630
        %2708 = vmatpush.bf16.msra.mxu0 %v2629
        %2709 = vmatpush.bf16.msra.mxu0 %v2628
        %2710 = vmatmul.bf16.gmra.mxu0 %v2478
        %v2711 = vpop.f32.mrf.mxu0
        %v2712 = vadd.f32 %v2699, %v2711
        %v2713 = vpop.f32.mrf.mxu0
        %2714 = vdwg.mxu0
        %2715 = vmatpush.bf16.msra.mxu0 %v2643
        %2716 = vmatpush.bf16.msra.mxu0 %v2642
        %2717 = vmatpush.bf16.msra.mxu0 %v2641
        %2718 = vmatpush.bf16.msra.mxu0 %v2640
        %2719 = vmatpush.bf16.msra.mxu0 %v2639
        %2720 = vmatpush.bf16.msra.mxu0 %v2638
        %2721 = vmatpush.bf16.msra.mxu0 %v2637
        %2722 = vmatpush.bf16.msra.mxu0 %v2636
        %2723 = vmatmul.bf16.gmra.mxu0 %v2479
        %v2724 = vpop.f32.mrf.mxu0
        %v2725 = vadd.f32 %v2712, %v2724
        %v2726 = vpop.f32.mrf.mxu0
        %2727 = vdwg.mxu0
        %2728 = vst [vmem:[%s412] sm:$0xff] %v2725
        %v2729 = vmul.f32 %v2161, %v2161
        %v2730 = vmul.f32 %v2265, %v2265
        %v2731 = vmul.f32 %v2369, %v2369
        %v2732 = vmul.f32 %v2473, %v2473
        %v2733 = vadd.f32 %v2729, %v2730
        %v2734 = vadd.f32 %v2733, %v2731
        %v2735 = vadd.f32 %v2734, %v2732
        %2736 = vadd.xlane.f32.xlu0 %v2735
        %v2737 = vpop.xlane.xlu0 %2736
        %v2738 = vadd.f32 %v2737, 1e-12
        %v2739 = vrsqrt.pop %v2738
        %v2740 = vmul.f32 %v2739, %v2738
        %v2741 = vmul.f32 %v2740, %v2739
        %v2742 = vmul.f32 0.5, %v2741
        %v2743 = vsub.f32 1.5, %v2742
        %v2744 = vmul.f32 %v2739, %v2743
        %vm2745 = vweird.f32 %v2738
        %vm2746 = vweird.f32 %v2739
        %vm2747 = vmor %vm2745, %vm2746
        %v2748 = vsel %vm2747, %v2739, %v2744
        %v2749 = vmul.f32 %v2161, %v2748
        %v2750 = vmul.f32 %v2265, %v2748
        %v2751 = vmul.f32 %v2369, %v2748
        %v2752 = vmul.f32 %v2473, %v2748
        %2753 = vst [vmem:[%s417] sm:$0xff] %v2749
        %2754 = vst [vmem:[%s417 + $0x8] sm:$0xff] %v2750
        %2755 = vst [vmem:[%s417 + $0x10] sm:$0xff] %v2751
        %2756 = vst [vmem:[%s417 + $0x18] sm:$0xff] %v2752
        %p2757 = scmp.lt.s32.totalorder %s27, 3
        %s2758 = scalar_select %p2757, %s27, 3
        %s2759 = smul.addr %s2758, 8
        %s2760 = scalar_lea.vmem %s5, %s2759
        %p2761 = scmp.lt.s32.totalorder %s27, 3
        %s2762 = scalar_select %p2761, %s27, 3
        %s2763 = smul.addr %s2762, 4
        %s2764 = smul.addr %s2763, 8
        %s2765 = scalar_lea.vmem %s6, %s2764
        // Predicated region
        $region57: #{fwd.1} parent=39 // pred_check
          %p2766 = pneg %p175
        $region58: #{fwd.1} parent=39 // pred_check_branch
          %2768 = sbr.rel (%p2766) target = $region60
        $region59: #{fwd.1} parent=39 // pred_region
          _
        $region60: #{fwd.1} parent=39 // pred_fallthru
          _
        // Predicated region
        $region61: #{fwd.1} parent=39 // pred_check
          %p2769 = pneg %p201
        $region62: #{fwd.1} parent=39 // pred_check_branch
          %2771 = sbr.rel (%p2769) target = $region64
        $region63: #{fwd.1} parent=39 // pred_region
          _
        $region64: #{fwd.1} parent=39 // pred_fallthru
          _
      $region40: #{fwd.1} parent=5 // pred_fallthru
        _
      %p2772 = scmp.le.s32.totalorder 2, %s22
      // Predicated region
      $region65: #{fwd.1} parent=5 // pred_check
        %p2773 = pneg %p2772
      $region66: #{fwd.1} parent=5 // pred_check_branch
        %2775 = sbr.rel (%p2773) target = $region68
      $region67: #{fwd.1} parent=5 // pred_region
        %s2776 = ssub.s32 %s22, 2
        // Predicated region
        $region69: #{fwd.1} parent=67 // pred_check
          %p2777 = pneg %p181
        $region70: #{fwd.1} parent=67 // pred_check_branch
          %2779 = sbr.rel (%p2777) target = $region72
        $region71: #{fwd.1} parent=67 // pred_region
          %p2780 = scmp.lt.s32.totalorder %s28, 3
          %s2781 = scalar_select %p2780, %s28, 3
          %s2782 = smul.addr %s2781, 8
          %s2783 = scalar_lea.vmem %s5, %s2782
        $region72: #{fwd.1} parent=67 // pred_fallthru
          _
        // Predicated region
        $region73: #{fwd.1} parent=67 // pred_check
          %p2784 = pneg %p207
        $region74: #{fwd.1} parent=67 // pred_check_branch
          %2786 = sbr.rel (%p2784) target = $region76
        $region75: #{fwd.1} parent=67 // pred_region
          %p2787 = scmp.lt.s32.totalorder %s28, 3
          %s2788 = scalar_select %p2787, %s28, 3
          %s2789 = smul.addr %s2788, 4
          %s2790 = smul.addr %s2789, 8
          %s2791 = scalar_lea.vmem %s6, %s2790
        $region76: #{fwd.1} parent=67 // pred_fallthru
          _
      $region68: #{fwd.1} parent=5 // pred_fallthru
        _
    $region6: #{fwd.1} parent=1 // loop_footer
      %s26 = sadd.s32 1, %s22
    $region7: #{fwd.1} parent=1 // loop_footer_branch
      %21 = sbr.rel target = $region3
    $region8: #{fwd.1} parent=1 // loop_exit
      _
    %2792 = vsyncpa [#allocation3], 1
    %s2793 = scalar_lea.sflag [#allocation3], 1
    %2794 = vsyncpa %s2793, 1
    %2795 = vsyncpa [#allocation5], 1
    %s2796 = scalar_lea.sflag [#allocation5], 1
    %2797 = vsyncpa %s2796, 1
    %2798 = vsyncpa [#allocation8], 1
    %s2799 = scalar_lea.sflag [#allocation8], 1
    %2800 = vsyncpa %s2799, 1

</llo_original>
